<compile_context>
chip_gen: v6e
topology: v6e:2x2x1
jax: 0.10.0
libtpu: 0.0.40
codegen_flags: <defaults>
</compile_context>

<pallas_src>
import jax
import jax.numpy as jnp
from jax.experimental import pallas as pl
from jax.experimental.pallas import tpu as pltpu


# ----------------------------- host-side setup ------------------------------

def precompute_freqs(dhead: int, end: int, theta: float = 10000.0):
    """Standard llama frequency table: cos/sin of shape [end, dhead//2]."""
    freqs = 1.0 / (theta ** (jnp.arange(0, dhead, 2, dtype=jnp.float32) / dhead))
    t = jnp.arange(end, dtype=jnp.float32)
    angles = jnp.outer(t, freqs)                       # [end, dhead//2]
    return jnp.cos(angles), jnp.sin(angles)


def compute_gather_cos_sin(dhead: int, end: int, position_ids):
    """Mirrors the torch helper: gather rows then interleave-duplicate to dhead."""
    cos, sin = precompute_freqs(dhead, end)            # [end, dhead//2]
    cos = cos[position_ids]                            # [S, dhead//2]
    sin = sin[position_ids]
    cos = jnp.stack([cos, cos], axis=-1).reshape(cos.shape[0], dhead)
    sin = jnp.stack([sin, sin], axis=-1).reshape(sin.shape[0], dhead)
    return cos[None, None], sin[None, None]            # [1, 1, S, dhead] (f32)


def get_rot_transformation_mat(dhead: int):
    """M[2i, 2i+1] = 1, M[2i+1, 2i] = -1  (so x @ M == interleaved rotate_half)."""
    m = jnp.zeros((dhead, dhead), dtype=jnp.float32)
    even = jnp.arange(0, dhead, 2)
    odd = jnp.arange(1, dhead, 2)
    m = m.at[even, odd].set(1.0)
    m = m.at[odd, even].set(-1.0)
    return m


# ------------------------------- Pallas kernel -------------------------------

def _rope_qk_kernel(cos_ref, sin_ref, t_ref, xq_ref, xk_ref, oq_ref, ok_ref):
    # cos/sin: (tq, D) f32 — loaded once per step, shared across all heads and
    # across both Q and K.  x / trans_mat stay bf16 so the matmul is a single
    # native MXU pass with f32 accumulation.
    cos = cos_ref[...]
    sin = sin_ref[...]
    t = t_ref[...]                                     # (D, D), same dtype as x

    def rope_one(x_ref, o_ref):
        nh = x_ref.shape[0]
        for h in range(nh):                            # static unroll over heads
            x = x_ref[h]                               # (tq, D) bf16
            rot = jnp.dot(x, t, preferred_element_type=jnp.float32)
            o_ref[h] = (x.astype(jnp.float32) * cos + rot * sin).astype(o_ref.dtype)

    rope_one(xq_ref, oq_ref)
    rope_one(xk_ref, ok_ref)


def _pick_tq(S, Hq, Hk, D, itemsize, budget_bytes=12 * 1024 * 1024):
    """Largest seq-tile whose double-buffered working set fits a safe VMEM budget."""
    for cand in (1024, 512, 256, 128, 64, 32, 16, 8):
        if cand > S or S % cand != 0:
            continue
        per_step = 2 * (                               # x2: double-buffered pipeline
            (Hq + Hk) * cand * D * 2 * itemsize        # q,k inputs + q,k outputs
            + 2 * cand * D * 4)                        # cos, sin (f32)
        if per_step <= budget_bytes:
            return cand
    return S                                           # full-extent fallback (tiny S)


def apply_rotary_qk_pallas(xq, xk, cos, sin, trans_mat, *, tq=None):
    """xq: [B, Hq, S, D], xk: [B, Hk, S, D], cos/sin: [1, 1, S, D], trans_mat: [D, D]."""
    B, Hq, S, D = xq.shape
    Bk, Hk, Sk, Dk = xk.shape
    assert (Bk, Sk, Dk) == (B, S, D)

    itemsize = jnp.dtype(xq.dtype).itemsize
    if tq is None:
        tq = _pick_tq(S, Hq, Hk, D, itemsize)
    # TODO(synk): no masking path for a ragged final seq tile (S % tq != 0).
    assert S % tq == 0

    cos2 = cos.reshape(S, D).astype(jnp.float32)       # keep f32 for accuracy
    sin2 = sin.reshape(S, D).astype(jnp.float32)
    t = trans_mat.astype(xq.dtype)                     # +/-1, 0: exact in bf16

    def x_spec(H):
        return pl.BlockSpec((None, H, tq, D), lambda b, s: (b, 0, s, 0))

    cs_spec = pl.BlockSpec((tq, D), lambda b, s: (s, 0))
    t_spec = pl.BlockSpec((D, D), lambda b, s: (0, 0))

    # TODO(synk): for head_dim < 128, fold two seq rows onto the lane axis with a
    # block-diagonal trans_mat to get lane-dense (…,128) stores; skipped here to
    # avoid an extra XLA relayout pass on this memory-bound op.
    # TODO(synk): decode mode (S == 1 per user) should sublane-tile the token axis
    # instead of this seq-tiled prefill layout.
    oq, ok = pl.pallas_call(
        _rope_qk_kernel,
        out_shape=(jax.ShapeDtypeStruct((B, Hq, S, D), xq.dtype),
                   jax.ShapeDtypeStruct((B, Hk, S, D), xk.dtype)),
        grid_spec=pltpu.PrefetchScalarGridSpec(
            num_scalar_prefetch=0,
            grid=(B, S // tq),
            in_specs=[cs_spec, cs_spec, t_spec, x_spec(Hq), x_spec(Hk)],
            out_specs=[x_spec(Hq), x_spec(Hk)],
        ),
        compiler_params=pltpu.CompilerParams(
            dimension_semantics=("parallel", "parallel")),
    )(cos2, sin2, t, xq, xk)
    return oq, ok


class TtLlamaRotaryPallas:
    """JAX/Pallas port of TtLlamaRotary (prefill semantics; decode is the same
    math — TT's sharded decode cos/sin prep is device-specific and not ported)."""

    def __init__(self, head_dim: int, dtype=jnp.bfloat16):
        self.head_dim = head_dim
        self.dtype = dtype
        self.transformation_mat = get_rot_transformation_mat(head_dim)

    def forward(self, xq, xk, cos, sin):
        # Q and K fused into one pallas_call: shared cos/sin/trans_mat fetches,
        # one launch, one pipeline warm-up.
        return apply_rotary_qk_pallas(xq, xk, cos, sin, self.transformation_mat)

    __call__ = forward


# ---------------------------------- main -------------------------------------

if __name__ == "__main__":
    # Small, module-consistent shapes: batch=1, n_heads=4, seq=128, head_dim=64.
    B, H, S, D = 1, 4, 128, 64
    key = jax.random.PRNGKey(0)
    kq, kk = jax.random.split(key)

    xq = jax.random.normal(kq, (B, H, S, D), dtype=jnp.float32).astype(jnp.bfloat16)
    xk = jax.random.normal(kk, (B, H, S, D), dtype=jnp.float32).astype(jnp.bfloat16)

    position_ids = jnp.arange(S)
    cos, sin = compute_gather_cos_sin(dhead=D, end=2 * S, position_ids=position_ids)

    rope = TtLlamaRotaryPallas(head_dim=D, dtype=jnp.bfloat16)
    out_q, out_k = rope(xq, xk, cos, sin)
    out_q = jax.block_until_ready(out_q)
    out_k = jax.block_until_ready(out_k)

    # Pure-JAX reference (same math, fp32).
    def ref_apply(x, cos, sin, t):
        xf = x.astype(jnp.float32)
        rot = jnp.einsum("bhsd,de->bhse", xf, t)
        return xf * cos + rot * sin

    t32 = get_rot_transformation_mat(D)
    ref_q = ref_apply(xq, cos, sin, t32)
    ref_k = ref_apply(xk, cos, sin, t32)

    assert jnp.allclose(out_q.astype(jnp.float32), ref_q, atol=5e-2, rtol=5e-2)
    assert jnp.allclose(out_k.astype(jnp.float32), ref_k, atol=5e-2, rtol=5e-2)

    print("KERNEL_OK")
</pallas_src>

<mosaic_0001>
module attributes {stable_mosaic.version = 11 : i64} {
  func.func @_rope_qk_kernel(%arg0: i32, %arg1: i32, %arg2: memref<128x64xf32, #tpu.memory_space<vmem>>, %arg3: memref<128x64xf32, #tpu.memory_space<vmem>>, %arg4: memref<64x64xbf16, #tpu.memory_space<vmem>>, %arg5: memref<1x4x128x64xbf16, #tpu.memory_space<vmem>>, %arg6: memref<1x4x128x64xbf16, #tpu.memory_space<vmem>>, %arg7: memref<1x4x128x64xbf16, #tpu.memory_space<vmem>>, %arg8: memref<1x4x128x64xbf16, #tpu.memory_space<vmem>>) attributes {dimension_semantics = [#tpu.dimension_semantics<parallel>, #tpu.dimension_semantics<parallel>], iteration_bounds = array<i64: 1, 1>, scalar_prefetch = 0 : i64, scratch_operands = 0 : i64, tpu.core_type = #tpu.core_type<tc>, window_params = [{transform_indices = @transform_0, window_bounds = array<i64: 128, 64>}, {transform_indices = @transform_1, window_bounds = array<i64: 128, 64>}, {pipeline_mode = #tpu.pipeline_mode<synchronous>, transform_indices = @transform_2, window_bounds = array<i64: 64, 64>}, {transform_indices = @transform_3, window_bounds = array<i64: 1, 4, 128, 64>}, {transform_indices = @transform_4, window_bounds = array<i64: 1, 4, 128, 64>}, {transform_indices = @transform_5, window_bounds = array<i64: 1, 4, 128, 64>}, {transform_indices = @transform_6, window_bounds = array<i64: 1, 4, 128, 64>}]} {
    %c0 = arith.constant 0 : index
    %c0_0 = arith.constant 0 : index
    %0 = vector.load %arg2[%c0, %c0_0] : memref<128x64xf32, #tpu.memory_space<vmem>>, vector<128x64xf32>
    %c0_1 = arith.constant 0 : index
    %c0_2 = arith.constant 0 : index
    %1 = vector.load %arg3[%c0_1, %c0_2] : memref<128x64xf32, #tpu.memory_space<vmem>>, vector<128x64xf32>
    %c0_3 = arith.constant 0 : index
    %c0_4 = arith.constant 0 : index
    %2 = vector.load %arg4[%c0_3, %c0_4] : memref<64x64xbf16, #tpu.memory_space<vmem>>, vector<64x64xbf16>
    %c0_5 = arith.constant 0 : index
    %c0_6 = arith.constant 0 : index
    %c0_7 = arith.constant 0 : index
    %c0_8 = arith.constant 0 : index
    %3 = vector.load %arg5[%c0_5, %c0_6, %c0_7, %c0_8] : memref<1x4x128x64xbf16, #tpu.memory_space<vmem>>, vector<1x1x128x64xbf16>
    %4 = vector.shape_cast %3 : vector<1x1x128x64xbf16> to vector<128x64xbf16>
    %cst = arith.constant dense<0.000000e+00> : vector<128x64xf32>
    %5 = tpu.matmul %4, %2, %cst {dimension_numbers = #tpu.dot_dimension_numbers<[1], [0], [0], [1], [0, 0, 1, 1], [], []>} : vector<128x64xbf16>, vector<64x64xbf16>, vector<128x64xf32> -> vector<128x64xf32>
    %6 = arith.extf %4 : vector<128x64xbf16> to vector<128x64xf32>
    %7 = arith.mulf %6, %0 : vector<128x64xf32>
    %8 = arith.mulf %5, %1 : vector<128x64xf32>
    %9 = arith.addf %7, %8 : vector<128x64xf32>
    %10 = arith.truncf %9 : vector<128x64xf32> to vector<128x64xbf16>
    %c0_9 = arith.constant 0 : index
    %c0_10 = arith.constant 0 : index
    %c0_11 = arith.constant 0 : index
    %c0_12 = arith.constant 0 : index
    %11 = vector.load %arg7[%c0_9, %c0_10, %c0_11, %c0_12] : memref<1x4x128x64xbf16, #tpu.memory_space<vmem>>, vector<1x1x128x64xbf16>
    %12 = vector.shape_cast %11 : vector<1x1x128x64xbf16> to vector<128x64xbf16>
    %13 = vector.shape_cast %10 : vector<128x64xbf16> to vector<1x1x128x64xbf16>
    tpu.vector_store %arg7[%c0_9, %c0_10, %c0_11, %c0_12], %13 {strides = array<i32>} : memref<1x4x128x64xbf16, #tpu.memory_space<vmem>>, vector<1x1x128x64xbf16>,
    %c0_13 = arith.constant 0 : index
    %c1 = arith.constant 1 : index
    %c0_14 = arith.constant 0 : index
    %c0_15 = arith.constant 0 : index
    %14 = vector.load %arg5[%c0_13, %c1, %c0_14, %c0_15] : memref<1x4x128x64xbf16, #tpu.memory_space<vmem>>, vector<1x1x128x64xbf16>
    %15 = vector.shape_cast %14 : vector<1x1x128x64xbf16> to vector<128x64xbf16>
    %cst_16 = arith.constant dense<0.000000e+00> : vector<128x64xf32>
    %16 = tpu.matmul %15, %2, %cst_16 {dimension_numbers = #tpu.dot_dimension_numbers<[1], [0], [0], [1], [0, 0, 1, 1], [], []>} : vector<128x64xbf16>, vector<64x64xbf16>, vector<128x64xf32> -> vector<128x64xf32>
    %17 = arith.extf %15 : vector<128x64xbf16> to vector<128x64xf32>
    %18 = arith.mulf %17, %0 : vector<128x64xf32>
    %19 = arith.mulf %16, %1 : vector<128x64xf32>
    %20 = arith.addf %18, %19 : vector<128x64xf32>
    %21 = arith.truncf %20 : vector<128x64xf32> to vector<128x64xbf16>
    %c0_17 = arith.constant 0 : index
    %c1_18 = arith.constant 1 : index
    %c0_19 = arith.constant 0 : index
    %c0_20 = arith.constant 0 : index
    %22 = vector.load %arg7[%c0_17, %c1_18, %c0_19, %c0_20] : memref<1x4x128x64xbf16, #tpu.memory_space<vmem>>, vector<1x1x128x64xbf16>
    %23 = vector.shape_cast %22 : vector<1x1x128x64xbf16> to vector<128x64xbf16>
    %24 = vector.shape_cast %21 : vector<128x64xbf16> to vector<1x1x128x64xbf16>
    tpu.vector_store %arg7[%c0_17, %c1_18, %c0_19, %c0_20], %24 {strides = array<i32>} : memref<1x4x128x64xbf16, #tpu.memory_space<vmem>>, vector<1x1x128x64xbf16>,
    %c0_21 = arith.constant 0 : index
    %c2 = arith.constant 2 : index
    %c0_22 = arith.constant 0 : index
    %c0_23 = arith.constant 0 : index
    %25 = vector.load %arg5[%c0_21, %c2, %c0_22, %c0_23] : memref<1x4x128x64xbf16, #tpu.memory_space<vmem>>, vector<1x1x128x64xbf16>
    %26 = vector.shape_cast %25 : vector<1x1x128x64xbf16> to vector<128x64xbf16>
    %cst_24 = arith.constant dense<0.000000e+00> : vector<128x64xf32>
    %27 = tpu.matmul %26, %2, %cst_24 {dimension_numbers = #tpu.dot_dimension_numbers<[1], [0], [0], [1], [0, 0, 1, 1], [], []>} : vector<128x64xbf16>, vector<64x64xbf16>, vector<128x64xf32> -> vector<128x64xf32>
    %28 = arith.extf %26 : vector<128x64xbf16> to vector<128x64xf32>
    %29 = arith.mulf %28, %0 : vector<128x64xf32>
    %30 = arith.mulf %27, %1 : vector<128x64xf32>
    %31 = arith.addf %29, %30 : vector<128x64xf32>
    %32 = arith.truncf %31 : vector<128x64xf32> to vector<128x64xbf16>
    %c0_25 = arith.constant 0 : index
    %c2_26 = arith.constant 2 : index
    %c0_27 = arith.constant 0 : index
    %c0_28 = arith.constant 0 : index
    %33 = vector.load %arg7[%c0_25, %c2_26, %c0_27, %c0_28] : memref<1x4x128x64xbf16, #tpu.memory_space<vmem>>, vector<1x1x128x64xbf16>
    %34 = vector.shape_cast %33 : vector<1x1x128x64xbf16> to vector<128x64xbf16>
    %35 = vector.shape_cast %32 : vector<128x64xbf16> to vector<1x1x128x64xbf16>
    tpu.vector_store %arg7[%c0_25, %c2_26, %c0_27, %c0_28], %35 {strides = array<i32>} : memref<1x4x128x64xbf16, #tpu.memory_space<vmem>>, vector<1x1x128x64xbf16>,
    %c0_29 = arith.constant 0 : index
    %c3 = arith.constant 3 : index
    %c0_30 = arith.constant 0 : index
    %c0_31 = arith.constant 0 : index
    %36 = vector.load %arg5[%c0_29, %c3, %c0_30, %c0_31] : memref<1x4x128x64xbf16, #tpu.memory_space<vmem>>, vector<1x1x128x64xbf16>
    %37 = vector.shape_cast %36 : vector<1x1x128x64xbf16> to vector<128x64xbf16>
    %cst_32 = arith.constant dense<0.000000e+00> : vector<128x64xf32>
    %38 = tpu.matmul %37, %2, %cst_32 {dimension_numbers = #tpu.dot_dimension_numbers<[1], [0], [0], [1], [0, 0, 1, 1], [], []>} : vector<128x64xbf16>, vector<64x64xbf16>, vector<128x64xf32> -> vector<128x64xf32>
    %39 = arith.extf %37 : vector<128x64xbf16> to vector<128x64xf32>
    %40 = arith.mulf %39, %0 : vector<128x64xf32>
    %41 = arith.mulf %38, %1 : vector<128x64xf32>
    %42 = arith.addf %40, %41 : vector<128x64xf32>
    %43 = arith.truncf %42 : vector<128x64xf32> to vector<128x64xbf16>
    %c0_33 = arith.constant 0 : index
    %c3_34 = arith.constant 3 : index
    %c0_35 = arith.constant 0 : index
    %c0_36 = arith.constant 0 : index
    %44 = vector.load %arg7[%c0_33, %c3_34, %c0_35, %c0_36] : memref<1x4x128x64xbf16, #tpu.memory_space<vmem>>, vector<1x1x128x64xbf16>
    %45 = vector.shape_cast %44 : vector<1x1x128x64xbf16> to vector<128x64xbf16>
    %46 = vector.shape_cast %43 : vector<128x64xbf16> to vector<1x1x128x64xbf16>
    tpu.vector_store %arg7[%c0_33, %c3_34, %c0_35, %c0_36], %46 {strides = array<i32>} : memref<1x4x128x64xbf16, #tpu.memory_space<vmem>>, vector<1x1x128x64xbf16>,
    %c0_37 = arith.constant 0 : index
    %c0_38 = arith.constant 0 : index
    %c0_39 = arith.constant 0 : index
    %c0_40 = arith.constant 0 : index
    %47 = vector.load %arg6[%c0_37, %c0_38, %c0_39, %c0_40] : memref<1x4x128x64xbf16, #tpu.memory_space<vmem>>, vector<1x1x128x64xbf16>
    %48 = vector.shape_cast %47 : vector<1x1x128x64xbf16> to vector<128x64xbf16>
    %cst_41 = arith.constant dense<0.000000e+00> : vector<128x64xf32>
    %49 = tpu.matmul %48, %2, %cst_41 {dimension_numbers = #tpu.dot_dimension_numbers<[1], [0], [0], [1], [0, 0, 1, 1], [], []>} : vector<128x64xbf16>, vector<64x64xbf16>, vector<128x64xf32> -> vector<128x64xf32>
    %50 = arith.extf %48 : vector<128x64xbf16> to vector<128x64xf32>
    %51 = arith.mulf %50, %0 : vector<128x64xf32>
    %52 = arith.mulf %49, %1 : vector<128x64xf32>
    %53 = arith.addf %51, %52 : vector<128x64xf32>
    %54 = arith.truncf %53 : vector<128x64xf32> to vector<128x64xbf16>
    %c0_42 = arith.constant 0 : index
    %c0_43 = arith.constant 0 : index
    %c0_44 = arith.constant 0 : index
    %c0_45 = arith.constant 0 : index
    %55 = vector.load %arg8[%c0_42, %c0_43, %c0_44, %c0_45] : memref<1x4x128x64xbf16, #tpu.memory_space<vmem>>, vector<1x1x128x64xbf16>
    %56 = vector.shape_cast %55 : vector<1x1x128x64xbf16> to vector<128x64xbf16>
    %57 = vector.shape_cast %54 : vector<128x64xbf16> to vector<1x1x128x64xbf16>
    tpu.vector_store %arg8[%c0_42, %c0_43, %c0_44, %c0_45], %57 {strides = array<i32>} : memref<1x4x128x64xbf16, #tpu.memory_space<vmem>>, vector<1x1x128x64xbf16>,
    %c0_46 = arith.constant 0 : index
    %c1_47 = arith.constant 1 : index
    %c0_48 = arith.constant 0 : index
    %c0_49 = arith.constant 0 : index
    %58 = vector.load %arg6[%c0_46, %c1_47, %c0_48, %c0_49] : memref<1x4x128x64xbf16, #tpu.memory_space<vmem>>, vector<1x1x128x64xbf16>
    %59 = vector.shape_cast %58 : vector<1x1x128x64xbf16> to vector<128x64xbf16>
    %cst_50 = arith.constant dense<0.000000e+00> : vector<128x64xf32>
    %60 = tpu.matmul %59, %2, %cst_50 {dimension_numbers = #tpu.dot_dimension_numbers<[1], [0], [0], [1], [0, 0, 1, 1], [], []>} : vector<128x64xbf16>, vector<64x64xbf16>, vector<128x64xf32> -> vector<128x64xf32>
    %61 = arith.extf %59 : vector<128x64xbf16> to vector<128x64xf32>
    %62 = arith.mulf %61, %0 : vector<128x64xf32>
    %63 = arith.mulf %60, %1 : vector<128x64xf32>
    %64 = arith.addf %62, %63 : vector<128x64xf32>
    %65 = arith.truncf %64 : vector<128x64xf32> to vector<128x64xbf16>
    %c0_51 = arith.constant 0 : index
    %c1_52 = arith.constant 1 : index
    %c0_53 = arith.constant 0 : index
    %c0_54 = arith.constant 0 : index
    %66 = vector.load %arg8[%c0_51, %c1_52, %c0_53, %c0_54] : memref<1x4x128x64xbf16, #tpu.memory_space<vmem>>, vector<1x1x128x64xbf16>
    %67 = vector.shape_cast %66 : vector<1x1x128x64xbf16> to vector<128x64xbf16>
    %68 = vector.shape_cast %65 : vector<128x64xbf16> to vector<1x1x128x64xbf16>
    tpu.vector_store %arg8[%c0_51, %c1_52, %c0_53, %c0_54], %68 {strides = array<i32>} : memref<1x4x128x64xbf16, #tpu.memory_space<vmem>>, vector<1x1x128x64xbf16>,
    %c0_55 = arith.constant 0 : index
    %c2_56 = arith.constant 2 : index
    %c0_57 = arith.constant 0 : index
    %c0_58 = arith.constant 0 : index
    %69 = vector.load %arg6[%c0_55, %c2_56, %c0_57, %c0_58] : memref<1x4x128x64xbf16, #tpu.memory_space<vmem>>, vector<1x1x128x64xbf16>
    %70 = vector.shape_cast %69 : vector<1x1x128x64xbf16> to vector<128x64xbf16>
    %cst_59 = arith.constant dense<0.000000e+00> : vector<128x64xf32>
    %71 = tpu.matmul %70, %2, %cst_59 {dimension_numbers = #tpu.dot_dimension_numbers<[1], [0], [0], [1], [0, 0, 1, 1], [], []>} : vector<128x64xbf16>, vector<64x64xbf16>, vector<128x64xf32> -> vector<128x64xf32>
    %72 = arith.extf %70 : vector<128x64xbf16> to vector<128x64xf32>
    %73 = arith.mulf %72, %0 : vector<128x64xf32>
    %74 = arith.mulf %71, %1 : vector<128x64xf32>
    %75 = arith.addf %73, %74 : vector<128x64xf32>
    %76 = arith.truncf %75 : vector<128x64xf32> to vector<128x64xbf16>
    %c0_60 = arith.constant 0 : index
    %c2_61 = arith.constant 2 : index
    %c0_62 = arith.constant 0 : index
    %c0_63 = arith.constant 0 : index
    %77 = vector.load %arg8[%c0_60, %c2_61, %c0_62, %c0_63] : memref<1x4x128x64xbf16, #tpu.memory_space<vmem>>, vector<1x1x128x64xbf16>
    %78 = vector.shape_cast %77 : vector<1x1x128x64xbf16> to vector<128x64xbf16>
    %79 = vector.shape_cast %76 : vector<128x64xbf16> to vector<1x1x128x64xbf16>
    tpu.vector_store %arg8[%c0_60, %c2_61, %c0_62, %c0_63], %79 {strides = array<i32>} : memref<1x4x128x64xbf16, #tpu.memory_space<vmem>>, vector<1x1x128x64xbf16>,
    %c0_64 = arith.constant 0 : index
    %c3_65 = arith.constant 3 : index
    %c0_66 = arith.constant 0 : index
    %c0_67 = arith.constant 0 : index
    %80 = vector.load %arg6[%c0_64, %c3_65, %c0_66, %c0_67] : memref<1x4x128x64xbf16, #tpu.memory_space<vmem>>, vector<1x1x128x64xbf16>
    %81 = vector.shape_cast %80 : vector<1x1x128x64xbf16> to vector<128x64xbf16>
    %cst_68 = arith.constant dense<0.000000e+00> : vector<128x64xf32>
    %82 = tpu.matmul %81, %2, %cst_68 {dimension_numbers = #tpu.dot_dimension_numbers<[1], [0], [0], [1], [0, 0, 1, 1], [], []>} : vector<128x64xbf16>, vector<64x64xbf16>, vector<128x64xf32> -> vector<128x64xf32>
    %83 = arith.extf %81 : vector<128x64xbf16> to vector<128x64xf32>
    %84 = arith.mulf %83, %0 : vector<128x64xf32>
    %85 = arith.mulf %82, %1 : vector<128x64xf32>
    %86 = arith.addf %84, %85 : vector<128x64xf32>
    %87 = arith.truncf %86 : vector<128x64xf32> to vector<128x64xbf16>
    %c0_69 = arith.constant 0 : index
    %c3_70 = arith.constant 3 : index
    %c0_71 = arith.constant 0 : index
    %c0_72 = arith.constant 0 : index
    %88 = vector.load %arg8[%c0_69, %c3_70, %c0_71, %c0_72] : memref<1x4x128x64xbf16, #tpu.memory_space<vmem>>, vector<1x1x128x64xbf16>
    %89 = vector.shape_cast %88 : vector<1x1x128x64xbf16> to vector<128x64xbf16>
    %90 = vector.shape_cast %87 : vector<128x64xbf16> to vector<1x1x128x64xbf16>
    tpu.vector_store %arg8[%c0_69, %c3_70, %c0_71, %c0_72], %90 {strides = array<i32>} : memref<1x4x128x64xbf16, #tpu.memory_space<vmem>>, vector<1x1x128x64xbf16>,
    return
  }
  func.func @transform_0(%arg0: i32, %arg1: i32) -> (i32, i32) {
    %c0_i32 = arith.constant 0 : i32
    %c0_i32_0 = arith.constant 0 : i32
    return %arg1, %c0_i32 : i32, i32
  }
  func.func @transform_1(%arg0: i32, %arg1: i32) -> (i32, i32) {
    %c0_i32 = arith.constant 0 : i32
    %c0_i32_0 = arith.constant 0 : i32
    return %arg1, %c0_i32 : i32, i32
  }
  func.func @transform_2(%arg0: i32, %arg1: i32) -> (i32, i32) {
    %c0_i32 = arith.constant 0 : i32
    %c0_i32_0 = arith.constant 0 : i32
    %c0_i32_1 = arith.constant 0 : i32
    return %c0_i32, %c0_i32_0 : i32, i32
  }
  func.func @transform_3(%arg0: i32, %arg1: i32) -> (i32, i32, i32, i32) {
    %c0_i32 = arith.constant 0 : i32
    %c0_i32_0 = arith.constant 0 : i32
    %c0_i32_1 = arith.constant 0 : i32
    return %arg0, %c0_i32, %arg1, %c0_i32_0 : i32, i32, i32, i32
  }
  func.func @transform_4(%arg0: i32, %arg1: i32) -> (i32, i32, i32, i32) {
    %c0_i32 = arith.constant 0 : i32
    %c0_i32_0 = arith.constant 0 : i32
    %c0_i32_1 = arith.constant 0 : i32
    return %arg0, %c0_i32, %arg1, %c0_i32_0 : i32, i32, i32, i32
  }
  func.func @transform_5(%arg0: i32, %arg1: i32) -> (i32, i32, i32, i32) {
    %c0_i32 = arith.constant 0 : i32
    %c0_i32_0 = arith.constant 0 : i32
    %c0_i32_1 = arith.constant 0 : i32
    return %arg0, %c0_i32, %arg1, %c0_i32_0 : i32, i32, i32, i32
  }
  func.func @transform_6(%arg0: i32, %arg1: i32) -> (i32, i32, i32, i32) {
    %c0_i32 = arith.constant 0 : i32
    %c0_i32_0 = arith.constant 0 : i32
    %c0_i32_1 = arith.constant 0 : i32
    return %arg0, %c0_i32, %arg1, %c0_i32_0 : i32, i32, i32, i32
  }
}

</mosaic_0001>

<llo_original>
// kernel: tpu_custom_call.1
$region0: #{tpu_custom_call.1}
  #allocation0 [shape = 'u32[]', space=smem, size = 0x4, offset = 0x4, fixed_abs, tag = 'smem constant byte address 0x4 - core index']
  #allocation1 [shape = 'u32[144,128]{1,0:T(1,128)}', space=vmem, size = 0x12000, scoped, tag = 'internal scratch']
  %s0 = inlined_call_operand.vmem [shape: f32[128,64], index: 0, kind: input, shape index: {}]
  %s1 = inlined_call_operand.vmem [shape: f32[128,64], index: 1, kind: input, shape index: {}]
  %s2 = inlined_call_operand.vmem [shape: bf16[64,64], index: 2, kind: input, shape index: {}]
  %s3 = inlined_call_operand.vmem [shape: bf16[1,4,128,64], index: 3, kind: input, shape index: {}]
  %s4 = inlined_call_operand.vmem [shape: bf16[1,4,128,64], index: 4, kind: input, shape index: {}]
  %s5 = inlined_call_operand.vmem [shape: bf16[1,4,128,64], index: 5, kind: output, shape index: {0}]
  %s6 = inlined_call_operand.vmem [shape: bf16[1,4,128,64], index: 6, kind: output, shape index: {1}]
  %7 = xla_tuple %s5, %s6
  %s8 = sld [smem:[#allocation0]]
  $region38: #{tpu_custom_call.1} parent=0
    _
  %s10 = ssub.s32 1, %s8
  %s11 = scalar_select 0, %s10, %s8
  // Predicated region
  $region2: #{tpu_custom_call.1} parent=0 // pred_check
    _
  $region3: #{tpu_custom_call.1} parent=0 // pred_check_branch
    %13 = sbr.rel (0) target = $region5
  $region4: #{tpu_custom_call.1} parent=0 // pred_region
    _
  $region5: #{tpu_custom_call.1} parent=0 // pred_fallthru
    _
  // Predicated region
  $region6: #{tpu_custom_call.1} parent=0 // pred_check
    _
  $region7: #{tpu_custom_call.1} parent=0 // pred_check_branch
    %15 = sbr.rel (0) target = $region9
  $region8: #{tpu_custom_call.1} parent=0 // pred_region
    _
  $region9: #{tpu_custom_call.1} parent=0 // pred_fallthru
    _
  // Predicated region
  $region10: #{tpu_custom_call.1} parent=0 // pred_check
    _
  $region11: #{tpu_custom_call.1} parent=0 // pred_check_branch
    %17 = sbr.rel (0) target = $region13
  $region12: #{tpu_custom_call.1} parent=0 // pred_region
    _
  $region13: #{tpu_custom_call.1} parent=0 // pred_fallthru
    _
  // Predicated region
  $region14: #{tpu_custom_call.1} parent=0 // pred_check
    _
  $region15: #{tpu_custom_call.1} parent=0 // pred_check_branch
    %19 = sbr.rel (0) target = $region17
  $region16: #{tpu_custom_call.1} parent=0 // pred_region
    _
  $region17: #{tpu_custom_call.1} parent=0 // pred_fallthru
    _
  // Predicated region
  $region18: #{tpu_custom_call.1} parent=0 // pred_check
    _
  $region19: #{tpu_custom_call.1} parent=0 // pred_check_branch
    %21 = sbr.rel (0) target = $region21
  $region20: #{tpu_custom_call.1} parent=0 // pred_region
    _
  $region21: #{tpu_custom_call.1} parent=0 // pred_fallthru
    _
  %v23 = vld [vmem:[%s0] sm:$0xff]
  %v24 = vld [vmem:[%s0 + $0x8] sm:$0xff]
  %v25 = vld [vmem:[%s0 + $0x10] sm:$0xff]
  %v26 = vld [vmem:[%s0 + $0x18] sm:$0xff]
  %v27 = vld [vmem:[%s0 + $0x20] sm:$0xff]
  %v28 = vld [vmem:[%s0 + $0x28] sm:$0xff]
  %v29 = vld [vmem:[%s0 + $0x30] sm:$0xff]
  %v30 = vld [vmem:[%s0 + $0x38] sm:$0xff]
  %v31 = vld [vmem:[%s0 + $0x40] sm:$0xff]
  %v32 = vld [vmem:[%s0 + $0x48] sm:$0xff]
  %v33 = vld [vmem:[%s0 + $0x50] sm:$0xff]
  %v34 = vld [vmem:[%s0 + $0x58] sm:$0xff]
  %v35 = vld [vmem:[%s0 + $0x60] sm:$0xff]
  %v36 = vld [vmem:[%s0 + $0x68] sm:$0xff]
  %v37 = vld [vmem:[%s0 + $0x70] sm:$0xff]
  %v38 = vld [vmem:[%s0 + $0x78] sm:$0xff]
  %v39 = vld [vmem:[%s1] sm:$0xff]
  %v40 = vld [vmem:[%s1 + $0x8] sm:$0xff]
  %v41 = vld [vmem:[%s1 + $0x10] sm:$0xff]
  %v42 = vld [vmem:[%s1 + $0x18] sm:$0xff]
  %v43 = vld [vmem:[%s1 + $0x20] sm:$0xff]
  %v44 = vld [vmem:[%s1 + $0x28] sm:$0xff]
  %v45 = vld [vmem:[%s1 + $0x30] sm:$0xff]
  %v46 = vld [vmem:[%s1 + $0x38] sm:$0xff]
  %v47 = vld [vmem:[%s1 + $0x40] sm:$0xff]
  %v48 = vld [vmem:[%s1 + $0x48] sm:$0xff]
  %v49 = vld [vmem:[%s1 + $0x50] sm:$0xff]
  %v50 = vld [vmem:[%s1 + $0x58] sm:$0xff]
  %v51 = vld [vmem:[%s1 + $0x60] sm:$0xff]
  %v52 = vld [vmem:[%s1 + $0x68] sm:$0xff]
  %v53 = vld [vmem:[%s1 + $0x70] sm:$0xff]
  %v54 = vld [vmem:[%s1 + $0x78] sm:$0xff]
  %v55 = vld [vmem:[%s2] sm:$0xf]
  %v56 = vld [vmem:[%s2 + $0x4] sm:$0xf]
  %v57 = vld [vmem:[%s2 + $0x8] sm:$0xf]
  %v58 = vld [vmem:[%s2 + $0xc] sm:$0xf]
  %v59 = vld [vmem:[%s2 + $0x10] sm:$0xf]
  %v60 = vld [vmem:[%s2 + $0x14] sm:$0xf]
  %v61 = vld [vmem:[%s2 + $0x18] sm:$0xf]
  %v62 = vld [vmem:[%s2 + $0x1c] sm:$0xf]
  %v63 = vld [vmem:[%s3] sm:$0xf]
  %v64 = vld [vmem:[%s3 + $0x4] sm:$0xf]
  %v65 = vld [vmem:[%s3 + $0x8] sm:$0xf]
  %v66 = vld [vmem:[%s3 + $0xc] sm:$0xf]
  %v67 = vld [vmem:[%s3 + $0x10] sm:$0xf]
  %v68 = vld [vmem:[%s3 + $0x14] sm:$0xf]
  %v69 = vld [vmem:[%s3 + $0x18] sm:$0xf]
  %v70 = vld [vmem:[%s3 + $0x1c] sm:$0xf]
  %v71 = vld [vmem:[%s3 + $0x20] sm:$0xf]
  %v72 = vld [vmem:[%s3 + $0x24] sm:$0xf]
  %v73 = vld [vmem:[%s3 + $0x28] sm:$0xf]
  %v74 = vld [vmem:[%s3 + $0x2c] sm:$0xf]
  %v75 = vld [vmem:[%s3 + $0x30] sm:$0xf]
  %v76 = vld [vmem:[%s3 + $0x34] sm:$0xf]
  %v77 = vld [vmem:[%s3 + $0x38] sm:$0xf]
  %v78 = vld [vmem:[%s3 + $0x3c] sm:$0xf]
  %v95 = vunpack.c.l.b16 %v63
  %v96 = vunpack.c.l.b16 %v64
  %v97 = vunpack.c.l.b16 %v65
  %v98 = vunpack.c.l.b16 %v66
  %v99 = vunpack.c.l.b16 %v67
  %v100 = vunpack.c.l.b16 %v68
  %v101 = vunpack.c.l.b16 %v69
  %v102 = vunpack.c.l.b16 %v70
  %v103 = vunpack.c.l.b16 %v71
  %v104 = vunpack.c.l.b16 %v72
  %v105 = vunpack.c.l.b16 %v73
  %v106 = vunpack.c.l.b16 %v74
  %v107 = vunpack.c.l.b16 %v75
  %v108 = vunpack.c.l.b16 %v76
  %v109 = vunpack.c.l.b16 %v77
  %v110 = vunpack.c.l.b16 %v78
  %v111 = vpack.c.b16 %v96, %v95
  %v112 = vpack.c.b16 %v98, %v97
  %v113 = vpack.c.b16 %v100, %v99
  %v114 = vpack.c.b16 %v102, %v101
  %v115 = vpack.c.b16 %v104, %v103
  %v116 = vpack.c.b16 %v106, %v105
  %v117 = vpack.c.b16 %v108, %v107
  %v118 = vpack.c.b16 %v110, %v109
  %v127 = vunpack.c.l.b16 %v55
  %v128 = vunpack.c.l.b16 %v56
  %v129 = vunpack.c.l.b16 %v57
  %v130 = vunpack.c.l.b16 %v58
  %v131 = vunpack.c.l.b16 %v59
  %v132 = vunpack.c.l.b16 %v60
  %v133 = vunpack.c.l.b16 %v61
  %v134 = vunpack.c.l.b16 %v62
  %v135 = vpack.c.b16 %v128, %v127
  %v136 = vpack.c.b16 %v130, %v129
  %v137 = vpack.c.b16 %v132, %v131
  %v138 = vpack.c.b16 %v134, %v133
  %vm143 = vcmask 523264
  %v145 = vsel %vm143, %v111, 0
  %v148 = vsel %vm143, %v112, 0
  %v151 = vsel %vm143, %v113, 0
  %v154 = vsel %vm143, %v114, 0
  %v157 = vsel %vm143, %v115, 0
  %v160 = vsel %vm143, %v116, 0
  %v163 = vsel %vm143, %v117, 0
  %v166 = vsel %vm143, %v118, 0
  %168 = vmatprep.subr.bf16.mxu0 0
  %169 = vmatpush1.bf16.msra.mxu0 0
  %170 = vmatprep.subr.bf16.mxu0 0
  %171 = vmatpush1.bf16.msra.mxu0 0
  %172 = vmatprep.subr.bf16.mxu0 0
  %173 = vmatpush1.bf16.msra.mxu0 0
  %174 = vmatprep.subr.bf16.mxu0 0
  %175 = vmatpush1.bf16.msra.mxu0 0
  %176 = vmatprep.subr.bf16.mxu0 0
  %177 = vmatpush1.bf16.msra.mxu0 %v138
  %178 = vmatprep.subr.bf16.mxu0 0
  %179 = vmatpush1.bf16.msra.mxu0 %v137
  %180 = vmatprep.subr.bf16.mxu0 0
  %181 = vmatpush1.bf16.msra.mxu0 %v136
  %182 = vmatprep.subr.bf16.mxu0 0
  %183 = vmatpush1.bf16.msra.mxu0 %v135
  %184 = vmatprep.subr.bf16.mxu0 0
  %185 = vmatpush2.bf16.msra.mxu0 0
  %186 = vmatprep.subr.bf16.mxu0 0
  %187 = vmatpush2.bf16.msra.mxu0 0
  %188 = vmatprep.subr.bf16.mxu0 0
  %189 = vmatpush2.bf16.msra.mxu0 0
  %190 = vmatprep.subr.bf16.mxu0 0
  %191 = vmatpush2.bf16.msra.mxu0 0
  %192 = vmatprep.subr.bf16.mxu0 0
  %193 = vmatpush2.bf16.msra.mxu0 0
  %194 = vmatprep.subr.bf16.mxu0 0
  %195 = vmatpush2.bf16.msra.mxu0 0
  %196 = vmatprep.subr.bf16.mxu0 0
  %197 = vmatpush2.bf16.msra.mxu0 0
  %198 = vmatprep.subr.bf16.mxu0 0
  %199 = vmatpush2.bf16.msra.mxu0 0
  %200 = vmatprep.mubr.bf16.mxu0 0
  %201 = vmatmul.mubr.bf16.gmra.mxu0 %v145
  %v202 = vpop.f32.mrf.mxu0
  %v203 = vadd.f32 0.0, %v202
  %v204 = vpop.f32.mrf.mxu0
  %v205 = vpop.f32.mrf.mxu0
  %v206 = vadd.f32 0.0, %v205
  %v207 = vpop.f32.mrf.mxu0
  %208 = vmatprep.mubr.bf16.mxu0 0
  %209 = vmatmul.mubr.bf16.gmra.mxu0 %v148
  %v210 = vpop.f32.mrf.mxu0
  %v211 = vadd.f32 0.0, %v210
  %v212 = vpop.f32.mrf.mxu0
  %v213 = vpop.f32.mrf.mxu0
  %v214 = vadd.f32 0.0, %v213
  %v215 = vpop.f32.mrf.mxu0
  %216 = vmatprep.mubr.bf16.mxu0 0
  %217 = vmatmul.mubr.bf16.gmra.mxu0 %v151
  %v218 = vpop.f32.mrf.mxu0
  %v219 = vadd.f32 0.0, %v218
  %v220 = vpop.f32.mrf.mxu0
  %v221 = vpop.f32.mrf.mxu0
  %v222 = vadd.f32 0.0, %v221
  %v223 = vpop.f32.mrf.mxu0
  %224 = vmatprep.mubr.bf16.mxu0 0
  %225 = vmatmul.mubr.bf16.gmra.mxu0 %v154
  %v226 = vpop.f32.mrf.mxu0
  %v227 = vadd.f32 0.0, %v226
  %v228 = vpop.f32.mrf.mxu0
  %v229 = vpop.f32.mrf.mxu0
  %v230 = vadd.f32 0.0, %v229
  %v231 = vpop.f32.mrf.mxu0
  %232 = vmatprep.mubr.bf16.mxu0 0
  %233 = vmatmul.mubr.bf16.gmra.mxu0 %v157
  %v234 = vpop.f32.mrf.mxu0
  %v235 = vadd.f32 0.0, %v234
  %v236 = vpop.f32.mrf.mxu0
  %v237 = vpop.f32.mrf.mxu0
  %v238 = vadd.f32 0.0, %v237
  %v239 = vpop.f32.mrf.mxu0
  %240 = vmatprep.mubr.bf16.mxu0 0
  %241 = vmatmul.mubr.bf16.gmra.mxu0 %v160
  %v242 = vpop.f32.mrf.mxu0
  %v243 = vadd.f32 0.0, %v242
  %v244 = vpop.f32.mrf.mxu0
  %v245 = vpop.f32.mrf.mxu0
  %v246 = vadd.f32 0.0, %v245
  %v247 = vpop.f32.mrf.mxu0
  %248 = vmatprep.mubr.bf16.mxu0 0
  %249 = vmatmul.mubr.bf16.gmra.mxu0 %v163
  %v250 = vpop.f32.mrf.mxu0
  %v251 = vadd.f32 0.0, %v250
  %v252 = vpop.f32.mrf.mxu0
  %v253 = vpop.f32.mrf.mxu0
  %v254 = vadd.f32 0.0, %v253
  %v255 = vpop.f32.mrf.mxu0
  %256 = vmatprep.mubr.bf16.mxu0 0
  %257 = vmatmul.mubr.bf16.gmra.mxu0 %v166
  %v258 = vpop.f32.mrf.mxu0
  %v259 = vadd.f32 0.0, %v258
  %v260 = vpop.f32.mrf.mxu0
  %v261 = vpop.f32.mrf.mxu0
  %v262 = vadd.f32 0.0, %v261
  %v263 = vpop.f32.mrf.mxu0
  %264 = vdwg.mxu0
  %v265 = vunpack.c.l.bf16 %v63
  %v266 = vunpack.c.l.bf16 %v64
  %v267 = vunpack.c.l.bf16 %v65
  %v268 = vunpack.c.l.bf16 %v66
  %v269 = vunpack.c.l.bf16 %v67
  %v270 = vunpack.c.l.bf16 %v68
  %v271 = vunpack.c.l.bf16 %v69
  %v272 = vunpack.c.l.bf16 %v70
  %v273 = vunpack.c.l.bf16 %v71
  %v274 = vunpack.c.l.bf16 %v72
  %v275 = vunpack.c.l.bf16 %v73
  %v276 = vunpack.c.l.bf16 %v74
  %v277 = vunpack.c.l.bf16 %v75
  %v278 = vunpack.c.l.bf16 %v76
  %v279 = vunpack.c.l.bf16 %v77
  %v280 = vunpack.c.l.bf16 %v78
  %v281 = vmul.f32 %v265, %v23
  %v282 = vmul.f32 %v266, %v24
  %v283 = vmul.f32 %v267, %v25
  %v284 = vmul.f32 %v268, %v26
  %v285 = vmul.f32 %v269, %v27
  %v286 = vmul.f32 %v270, %v28
  %v287 = vmul.f32 %v271, %v29
  %v288 = vmul.f32 %v272, %v30
  %v289 = vmul.f32 %v273, %v31
  %v290 = vmul.f32 %v274, %v32
  %v291 = vmul.f32 %v275, %v33
  %v292 = vmul.f32 %v276, %v34
  %v293 = vmul.f32 %v277, %v35
  %v294 = vmul.f32 %v278, %v36
  %v295 = vmul.f32 %v279, %v37
  %v296 = vmul.f32 %v280, %v38
  %v297 = vmul.f32 %v203, %v39
  %v298 = vmul.f32 %v206, %v40
  %v299 = vmul.f32 %v211, %v41
  %v300 = vmul.f32 %v214, %v42
  %v301 = vmul.f32 %v219, %v43
  %v302 = vmul.f32 %v222, %v44
  %v303 = vmul.f32 %v227, %v45
  %v304 = vmul.f32 %v230, %v46
  %v305 = vmul.f32 %v235, %v47
  %v306 = vmul.f32 %v238, %v48
  %v307 = vmul.f32 %v243, %v49
  %v308 = vmul.f32 %v246, %v50
  %v309 = vmul.f32 %v251, %v51
  %v310 = vmul.f32 %v254, %v52
  %v311 = vmul.f32 %v259, %v53
  %v312 = vmul.f32 %v262, %v54
  %v313 = vadd.f32 %v281, %v297
  %v314 = vadd.f32 %v282, %v298
  %v315 = vadd.f32 %v283, %v299
  %v316 = vadd.f32 %v284, %v300
  %v317 = vadd.f32 %v285, %v301
  %v318 = vadd.f32 %v286, %v302
  %v319 = vadd.f32 %v287, %v303
  %v320 = vadd.f32 %v288, %v304
  %v321 = vadd.f32 %v289, %v305
  %v322 = vadd.f32 %v290, %v306
  %v323 = vadd.f32 %v291, %v307
  %v324 = vadd.f32 %v292, %v308
  %v325 = vadd.f32 %v293, %v309
  %v326 = vadd.f32 %v294, %v310
  %v327 = vadd.f32 %v295, %v311
  %v328 = vadd.f32 %v296, %v312
  %v329 = vpack.c.bf16 %v314, %v313
  %v330 = vpack.c.bf16 %v316, %v315
  %v331 = vpack.c.bf16 %v318, %v317
  %v332 = vpack.c.bf16 %v320, %v319
  %v333 = vpack.c.bf16 %v322, %v321
  %v334 = vpack.c.bf16 %v324, %v323
  %v335 = vpack.c.bf16 %v326, %v325
  %v336 = vpack.c.bf16 %v328, %v327
  %v345 = vunpack.c.l.b16 %v329
  %v346 = vunpack.c.h.b16 %v329
  %v347 = vunpack.c.l.b16 %v330
  %v348 = vunpack.c.h.b16 %v330
  %v349 = vunpack.c.l.b16 %v331
  %v350 = vunpack.c.h.b16 %v331
  %v351 = vunpack.c.l.b16 %v332
  %v352 = vunpack.c.h.b16 %v332
  %v353 = vunpack.c.l.b16 %v333
  %v354 = vunpack.c.h.b16 %v333
  %v355 = vunpack.c.l.b16 %v334
  %v356 = vunpack.c.h.b16 %v334
  %v357 = vunpack.c.l.b16 %v335
  %v358 = vunpack.c.h.b16 %v335
  %v359 = vunpack.c.l.b16 %v336
  %v360 = vunpack.c.h.b16 %v336
  %v361 = vpack.c.b16 %v345, %v345
  %v362 = vpack.c.b16 %v346, %v346
  %v363 = vpack.c.b16 %v347, %v347
  %v364 = vpack.c.b16 %v348, %v348
  %v365 = vpack.c.b16 %v349, %v349
  %v366 = vpack.c.b16 %v350, %v350
  %v367 = vpack.c.b16 %v351, %v351
  %v368 = vpack.c.b16 %v352, %v352
  %v369 = vpack.c.b16 %v353, %v353
  %v370 = vpack.c.b16 %v354, %v354
  %v371 = vpack.c.b16 %v355, %v355
  %v372 = vpack.c.b16 %v356, %v356
  %v373 = vpack.c.b16 %v357, %v357
  %v374 = vpack.c.b16 %v358, %v358
  %v375 = vpack.c.b16 %v359, %v359
  %v376 = vpack.c.b16 %v360, %v360
  %vm393 = vcmask 519168
  %394 = vst.msk [vmem:[%s5] sm:$0xf] %vm393, %v361
  %395 = vst.msk [vmem:[%s5 + $0x4] sm:$0xf] %vm393, %v362
  %396 = vst.msk [vmem:[%s5 + $0x8] sm:$0xf] %vm393, %v363
  %397 = vst.msk [vmem:[%s5 + $0xc] sm:$0xf] %vm393, %v364
  %398 = vst.msk [vmem:[%s5 + $0x10] sm:$0xf] %vm393, %v365
  %399 = vst.msk [vmem:[%s5 + $0x14] sm:$0xf] %vm393, %v366
  %400 = vst.msk [vmem:[%s5 + $0x18] sm:$0xf] %vm393, %v367
  %401 = vst.msk [vmem:[%s5 + $0x1c] sm:$0xf] %vm393, %v368
  %402 = vst.msk [vmem:[%s5 + $0x20] sm:$0xf] %vm393, %v369
  %403 = vst.msk [vmem:[%s5 + $0x24] sm:$0xf] %vm393, %v370
  %404 = vst.msk [vmem:[%s5 + $0x28] sm:$0xf] %vm393, %v371
  %405 = vst.msk [vmem:[%s5 + $0x2c] sm:$0xf] %vm393, %v372
  %406 = vst.msk [vmem:[%s5 + $0x30] sm:$0xf] %vm393, %v373
  %407 = vst.msk [vmem:[%s5 + $0x34] sm:$0xf] %vm393, %v374
  %408 = vst.msk [vmem:[%s5 + $0x38] sm:$0xf] %vm393, %v375
  %409 = vst.msk [vmem:[%s5 + $0x3c] sm:$0xf] %vm393, %v376
  %s410 = scalar_lea.vmem %s3, 64
  %v411 = vld [vmem:[%s410] sm:$0xf]
  %v412 = vld [vmem:[%s410 + $0x4] sm:$0xf]
  %v413 = vld [vmem:[%s410 + $0x8] sm:$0xf]
  %v414 = vld [vmem:[%s410 + $0xc] sm:$0xf]
  %v415 = vld [vmem:[%s410 + $0x10] sm:$0xf]
  %v416 = vld [vmem:[%s410 + $0x14] sm:$0xf]
  %v417 = vld [vmem:[%s410 + $0x18] sm:$0xf]
  %v418 = vld [vmem:[%s410 + $0x1c] sm:$0xf]
  %v419 = vld [vmem:[%s410 + $0x20] sm:$0xf]
  %v420 = vld [vmem:[%s410 + $0x24] sm:$0xf]
  %v421 = vld [vmem:[%s410 + $0x28] sm:$0xf]
  %v422 = vld [vmem:[%s410 + $0x2c] sm:$0xf]
  %v423 = vld [vmem:[%s410 + $0x30] sm:$0xf]
  %v424 = vld [vmem:[%s410 + $0x34] sm:$0xf]
  %v425 = vld [vmem:[%s410 + $0x38] sm:$0xf]
  %v426 = vld [vmem:[%s410 + $0x3c] sm:$0xf]
  %v443 = vunpack.c.l.b16 %v411
  %v444 = vunpack.c.l.b16 %v412
  %v445 = vunpack.c.l.b16 %v413
  %v446 = vunpack.c.l.b16 %v414
  %v447 = vunpack.c.l.b16 %v415
  %v448 = vunpack.c.l.b16 %v416
  %v449 = vunpack.c.l.b16 %v417
  %v450 = vunpack.c.l.b16 %v418
  %v451 = vunpack.c.l.b16 %v419
  %v452 = vunpack.c.l.b16 %v420
  %v453 = vunpack.c.l.b16 %v421
  %v454 = vunpack.c.l.b16 %v422
  %v455 = vunpack.c.l.b16 %v423
  %v456 = vunpack.c.l.b16 %v424
  %v457 = vunpack.c.l.b16 %v425
  %v458 = vunpack.c.l.b16 %v426
  %v459 = vpack.c.b16 %v444, %v443
  %v460 = vpack.c.b16 %v446, %v445
  %v461 = vpack.c.b16 %v448, %v447
  %v462 = vpack.c.b16 %v450, %v449
  %v463 = vpack.c.b16 %v452, %v451
  %v464 = vpack.c.b16 %v454, %v453
  %v465 = vpack.c.b16 %v456, %v455
  %v466 = vpack.c.b16 %v458, %v457
  %v468 = vsel %vm143, %v459, 0
  %v471 = vsel %vm143, %v460, 0
  %v474 = vsel %vm143, %v461, 0
  %v477 = vsel %vm143, %v462, 0
  %v480 = vsel %vm143, %v463, 0
  %v483 = vsel %vm143, %v464, 0
  %v486 = vsel %vm143, %v465, 0
  %v489 = vsel %vm143, %v466, 0
  %491 = vmatprep.subr.bf16.mxu0 0
  %492 = vmatpush1.bf16.msra.mxu0 0
  %493 = vmatprep.subr.bf16.mxu0 0
  %494 = vmatpush1.bf16.msra.mxu0 0
  %495 = vmatprep.subr.bf16.mxu0 0
  %496 = vmatpush1.bf16.msra.mxu0 0
  %497 = vmatprep.subr.bf16.mxu0 0
  %498 = vmatpush1.bf16.msra.mxu0 0
  %499 = vmatprep.subr.bf16.mxu0 0
  %500 = vmatpush1.bf16.msra.mxu0 %v138
  %501 = vmatprep.subr.bf16.mxu0 0
  %502 = vmatpush1.bf16.msra.mxu0 %v137
  %503 = vmatprep.subr.bf16.mxu0 0
  %504 = vmatpush1.bf16.msra.mxu0 %v136
  %505 = vmatprep.subr.bf16.mxu0 0
  %506 = vmatpush1.bf16.msra.mxu0 %v135
  %507 = vmatprep.subr.bf16.mxu0 0
  %508 = vmatpush2.bf16.msra.mxu0 0
  %509 = vmatprep.subr.bf16.mxu0 0
  %510 = vmatpush2.bf16.msra.mxu0 0
  %511 = vmatprep.subr.bf16.mxu0 0
  %512 = vmatpush2.bf16.msra.mxu0 0
  %513 = vmatprep.subr.bf16.mxu0 0
  %514 = vmatpush2.bf16.msra.mxu0 0
  %515 = vmatprep.subr.bf16.mxu0 0
  %516 = vmatpush2.bf16.msra.mxu0 0
  %517 = vmatprep.subr.bf16.mxu0 0
  %518 = vmatpush2.bf16.msra.mxu0 0
  %519 = vmatprep.subr.bf16.mxu0 0
  %520 = vmatpush2.bf16.msra.mxu0 0
  %521 = vmatprep.subr.bf16.mxu0 0
  %522 = vmatpush2.bf16.msra.mxu0 0
  %523 = vmatprep.mubr.bf16.mxu0 0
  %524 = vmatmul.mubr.bf16.gmra.mxu0 %v468
  %v525 = vpop.f32.mrf.mxu0
  %v526 = vadd.f32 0.0, %v525
  %v527 = vpop.f32.mrf.mxu0
  %v528 = vpop.f32.mrf.mxu0
  %v529 = vadd.f32 0.0, %v528
  %v530 = vpop.f32.mrf.mxu0
  %531 = vmatprep.mubr.bf16.mxu0 0
  %532 = vmatmul.mubr.bf16.gmra.mxu0 %v471
  %v533 = vpop.f32.mrf.mxu0
  %v534 = vadd.f32 0.0, %v533
  %v535 = vpop.f32.mrf.mxu0
  %v536 = vpop.f32.mrf.mxu0
  %v537 = vadd.f32 0.0, %v536
  %v538 = vpop.f32.mrf.mxu0
  %539 = vmatprep.mubr.bf16.mxu0 0
  %540 = vmatmul.mubr.bf16.gmra.mxu0 %v474
  %v541 = vpop.f32.mrf.mxu0
  %v542 = vadd.f32 0.0, %v541
  %v543 = vpop.f32.mrf.mxu0
  %v544 = vpop.f32.mrf.mxu0
  %v545 = vadd.f32 0.0, %v544
  %v546 = vpop.f32.mrf.mxu0
  %547 = vmatprep.mubr.bf16.mxu0 0
  %548 = vmatmul.mubr.bf16.gmra.mxu0 %v477
  %v549 = vpop.f32.mrf.mxu0
  %v550 = vadd.f32 0.0, %v549
  %v551 = vpop.f32.mrf.mxu0
  %v552 = vpop.f32.mrf.mxu0
  %v553 = vadd.f32 0.0, %v552
  %v554 = vpop.f32.mrf.mxu0
  %555 = vmatprep.mubr.bf16.mxu0 0
  %556 = vmatmul.mubr.bf16.gmra.mxu0 %v480
  %v557 = vpop.f32.mrf.mxu0
  %v558 = vadd.f32 0.0, %v557
  %v559 = vpop.f32.mrf.mxu0
  %v560 = vpop.f32.mrf.mxu0
  %v561 = vadd.f32 0.0, %v560
  %v562 = vpop.f32.mrf.mxu0
  %563 = vmatprep.mubr.bf16.mxu0 0
  %564 = vmatmul.mubr.bf16.gmra.mxu0 %v483
  %v565 = vpop.f32.mrf.mxu0
  %v566 = vadd.f32 0.0, %v565
  %v567 = vpop.f32.mrf.mxu0
  %v568 = vpop.f32.mrf.mxu0
  %v569 = vadd.f32 0.0, %v568
  %v570 = vpop.f32.mrf.mxu0
  %571 = vmatprep.mubr.bf16.mxu0 0
  %572 = vmatmul.mubr.bf16.gmra.mxu0 %v486
  %v573 = vpop.f32.mrf.mxu0
  %v574 = vadd.f32 0.0, %v573
  %v575 = vpop.f32.mrf.mxu0
  %v576 = vpop.f32.mrf.mxu0
  %v577 = vadd.f32 0.0, %v576
  %v578 = vpop.f32.mrf.mxu0
  %579 = vmatprep.mubr.bf16.mxu0 0
  %580 = vmatmul.mubr.bf16.gmra.mxu0 %v489
  %v581 = vpop.f32.mrf.mxu0
  %v582 = vadd.f32 0.0, %v581
  %v583 = vpop.f32.mrf.mxu0
  %v584 = vpop.f32.mrf.mxu0
  %v585 = vadd.f32 0.0, %v584
  %v586 = vpop.f32.mrf.mxu0
  %587 = vdwg.mxu0
  %v588 = vunpack.c.l.bf16 %v411
  %v589 = vunpack.c.l.bf16 %v412
  %v590 = vunpack.c.l.bf16 %v413
  %v591 = vunpack.c.l.bf16 %v414
  %v592 = vunpack.c.l.bf16 %v415
  %v593 = vunpack.c.l.bf16 %v416
  %v594 = vunpack.c.l.bf16 %v417
  %v595 = vunpack.c.l.bf16 %v418
  %v596 = vunpack.c.l.bf16 %v419
  %v597 = vunpack.c.l.bf16 %v420
  %v598 = vunpack.c.l.bf16 %v421
  %v599 = vunpack.c.l.bf16 %v422
  %v600 = vunpack.c.l.bf16 %v423
  %v601 = vunpack.c.l.bf16 %v424
  %v602 = vunpack.c.l.bf16 %v425
  %v603 = vunpack.c.l.bf16 %v426
  %v604 = vmul.f32 %v588, %v23
  %v605 = vmul.f32 %v589, %v24
  %v606 = vmul.f32 %v590, %v25
  %v607 = vmul.f32 %v591, %v26
  %v608 = vmul.f32 %v592, %v27
  %v609 = vmul.f32 %v593, %v28
  %v610 = vmul.f32 %v594, %v29
  %v611 = vmul.f32 %v595, %v30
  %v612 = vmul.f32 %v596, %v31
  %v613 = vmul.f32 %v597, %v32
  %v614 = vmul.f32 %v598, %v33
  %v615 = vmul.f32 %v599, %v34
  %v616 = vmul.f32 %v600, %v35
  %v617 = vmul.f32 %v601, %v36
  %v618 = vmul.f32 %v602, %v37
  %v619 = vmul.f32 %v603, %v38
  %v620 = vmul.f32 %v526, %v39
  %v621 = vmul.f32 %v529, %v40
  %v622 = vmul.f32 %v534, %v41
  %v623 = vmul.f32 %v537, %v42
  %v624 = vmul.f32 %v542, %v43
  %v625 = vmul.f32 %v545, %v44
  %v626 = vmul.f32 %v550, %v45
  %v627 = vmul.f32 %v553, %v46
  %v628 = vmul.f32 %v558, %v47
  %v629 = vmul.f32 %v561, %v48
  %v630 = vmul.f32 %v566, %v49
  %v631 = vmul.f32 %v569, %v50
  %v632 = vmul.f32 %v574, %v51
  %v633 = vmul.f32 %v577, %v52
  %v634 = vmul.f32 %v582, %v53
  %v635 = vmul.f32 %v585, %v54
  %v636 = vadd.f32 %v604, %v620
  %v637 = vadd.f32 %v605, %v621
  %v638 = vadd.f32 %v606, %v622
  %v639 = vadd.f32 %v607, %v623
  %v640 = vadd.f32 %v608, %v624
  %v641 = vadd.f32 %v609, %v625
  %v642 = vadd.f32 %v610, %v626
  %v643 = vadd.f32 %v611, %v627
  %v644 = vadd.f32 %v612, %v628
  %v645 = vadd.f32 %v613, %v629
  %v646 = vadd.f32 %v614, %v630
  %v647 = vadd.f32 %v615, %v631
  %v648 = vadd.f32 %v616, %v632
  %v649 = vadd.f32 %v617, %v633
  %v650 = vadd.f32 %v618, %v634
  %v651 = vadd.f32 %v619, %v635
  %v652 = vpack.c.bf16 %v637, %v636
  %v653 = vpack.c.bf16 %v639, %v638
  %v654 = vpack.c.bf16 %v641, %v640
  %v655 = vpack.c.bf16 %v643, %v642
  %v656 = vpack.c.bf16 %v645, %v644
  %v657 = vpack.c.bf16 %v647, %v646
  %v658 = vpack.c.bf16 %v649, %v648
  %v659 = vpack.c.bf16 %v651, %v650
  %v668 = vunpack.c.l.b16 %v652
  %v669 = vunpack.c.h.b16 %v652
  %v670 = vunpack.c.l.b16 %v653
  %v671 = vunpack.c.h.b16 %v653
  %v672 = vunpack.c.l.b16 %v654
  %v673 = vunpack.c.h.b16 %v654
  %v674 = vunpack.c.l.b16 %v655
  %v675 = vunpack.c.h.b16 %v655
  %v676 = vunpack.c.l.b16 %v656
  %v677 = vunpack.c.h.b16 %v656
  %v678 = vunpack.c.l.b16 %v657
  %v679 = vunpack.c.h.b16 %v657
  %v680 = vunpack.c.l.b16 %v658
  %v681 = vunpack.c.h.b16 %v658
  %v682 = vunpack.c.l.b16 %v659
  %v683 = vunpack.c.h.b16 %v659
  %v684 = vpack.c.b16 %v668, %v668
  %v685 = vpack.c.b16 %v669, %v669
  %v686 = vpack.c.b16 %v670, %v670
  %v687 = vpack.c.b16 %v671, %v671
  %v688 = vpack.c.b16 %v672, %v672
  %v689 = vpack.c.b16 %v673, %v673
  %v690 = vpack.c.b16 %v674, %v674
  %v691 = vpack.c.b16 %v675, %v675
  %v692 = vpack.c.b16 %v676, %v676
  %v693 = vpack.c.b16 %v677, %v677
  %v694 = vpack.c.b16 %v678, %v678
  %v695 = vpack.c.b16 %v679, %v679
  %v696 = vpack.c.b16 %v680, %v680
  %v697 = vpack.c.b16 %v681, %v681
  %v698 = vpack.c.b16 %v682, %v682
  %v699 = vpack.c.b16 %v683, %v683
  %s716 = scalar_lea.vmem %s5, 64
  %717 = vst.msk [vmem:[%s716] sm:$0xf] %vm393, %v684
  %718 = vst.msk [vmem:[%s716 + $0x4] sm:$0xf] %vm393, %v685
  %719 = vst.msk [vmem:[%s716 + $0x8] sm:$0xf] %vm393, %v686
  %720 = vst.msk [vmem:[%s716 + $0xc] sm:$0xf] %vm393, %v687
  %721 = vst.msk [vmem:[%s716 + $0x10] sm:$0xf] %vm393, %v688
  %722 = vst.msk [vmem:[%s716 + $0x14] sm:$0xf] %vm393, %v689
  %723 = vst.msk [vmem:[%s716 + $0x18] sm:$0xf] %vm393, %v690
  %724 = vst.msk [vmem:[%s716 + $0x1c] sm:$0xf] %vm393, %v691
  %725 = vst.msk [vmem:[%s716 + $0x20] sm:$0xf] %vm393, %v692
  %726 = vst.msk [vmem:[%s716 + $0x24] sm:$0xf] %vm393, %v693
  %727 = vst.msk [vmem:[%s716 + $0x28] sm:$0xf] %vm393, %v694
  %728 = vst.msk [vmem:[%s716 + $0x2c] sm:$0xf] %vm393, %v695
  %729 = vst.msk [vmem:[%s716 + $0x30] sm:$0xf] %vm393, %v696
  %730 = vst.msk [vmem:[%s716 + $0x34] sm:$0xf] %vm393, %v697
  %731 = vst.msk [vmem:[%s716 + $0x38] sm:$0xf] %vm393, %v698
  %732 = vst.msk [vmem:[%s716 + $0x3c] sm:$0xf] %vm393, %v699
  %s733 = scalar_lea.vmem %s3, 128
  %v734 = vld [vmem:[%s733] sm:$0xf]
  %v735 = vld [vmem:[%s733 + $0x4] sm:$0xf]
  %v736 = vld [vmem:[%s733 + $0x8] sm:$0xf]
  %v737 = vld [vmem:[%s733 + $0xc] sm:$0xf]
  %v738 = vld [vmem:[%s733 + $0x10] sm:$0xf]
  %v739 = vld [vmem:[%s733 + $0x14] sm:$0xf]
  %v740 = vld [vmem:[%s733 + $0x18] sm:$0xf]
  %v741 = vld [vmem:[%s733 + $0x1c] sm:$0xf]
  %v742 = vld [vmem:[%s733 + $0x20] sm:$0xf]
  %v743 = vld [vmem:[%s733 + $0x24] sm:$0xf]
  %v744 = vld [vmem:[%s733 + $0x28] sm:$0xf]
  %v745 = vld [vmem:[%s733 + $0x2c] sm:$0xf]
  %v746 = vld [vmem:[%s733 + $0x30] sm:$0xf]
  %v747 = vld [vmem:[%s733 + $0x34] sm:$0xf]
  %v748 = vld [vmem:[%s733 + $0x38] sm:$0xf]
  %v749 = vld [vmem:[%s733 + $0x3c] sm:$0xf]
  %v766 = vunpack.c.l.b16 %v734
  %v767 = vunpack.c.l.b16 %v735
  %v768 = vunpack.c.l.b16 %v736
  %v769 = vunpack.c.l.b16 %v737
  %v770 = vunpack.c.l.b16 %v738
  %v771 = vunpack.c.l.b16 %v739
  %v772 = vunpack.c.l.b16 %v740
  %v773 = vunpack.c.l.b16 %v741
  %v774 = vunpack.c.l.b16 %v742
  %v775 = vunpack.c.l.b16 %v743
  %v776 = vunpack.c.l.b16 %v744
  %v777 = vunpack.c.l.b16 %v745
  %v778 = vunpack.c.l.b16 %v746
  %v779 = vunpack.c.l.b16 %v747
  %v780 = vunpack.c.l.b16 %v748
  %v781 = vunpack.c.l.b16 %v749
  %v782 = vpack.c.b16 %v767, %v766
  %v783 = vpack.c.b16 %v769, %v768
  %v784 = vpack.c.b16 %v771, %v770
  %v785 = vpack.c.b16 %v773, %v772
  %v786 = vpack.c.b16 %v775, %v774
  %v787 = vpack.c.b16 %v777, %v776
  %v788 = vpack.c.b16 %v779, %v778
  %v789 = vpack.c.b16 %v781, %v780
  %v791 = vsel %vm143, %v782, 0
  %v794 = vsel %vm143, %v783, 0
  %v797 = vsel %vm143, %v784, 0
  %v800 = vsel %vm143, %v785, 0
  %v803 = vsel %vm143, %v786, 0
  %v806 = vsel %vm143, %v787, 0
  %v809 = vsel %vm143, %v788, 0
  %v812 = vsel %vm143, %v789, 0
  %814 = vmatprep.subr.bf16.mxu0 0
  %815 = vmatpush1.bf16.msra.mxu0 0
  %816 = vmatprep.subr.bf16.mxu0 0
  %817 = vmatpush1.bf16.msra.mxu0 0
  %818 = vmatprep.subr.bf16.mxu0 0
  %819 = vmatpush1.bf16.msra.mxu0 0
  %820 = vmatprep.subr.bf16.mxu0 0
  %821 = vmatpush1.bf16.msra.mxu0 0
  %822 = vmatprep.subr.bf16.mxu0 0
  %823 = vmatpush1.bf16.msra.mxu0 %v138
  %824 = vmatprep.subr.bf16.mxu0 0
  %825 = vmatpush1.bf16.msra.mxu0 %v137
  %826 = vmatprep.subr.bf16.mxu0 0
  %827 = vmatpush1.bf16.msra.mxu0 %v136
  %828 = vmatprep.subr.bf16.mxu0 0
  %829 = vmatpush1.bf16.msra.mxu0 %v135
  %830 = vmatprep.subr.bf16.mxu0 0
  %831 = vmatpush2.bf16.msra.mxu0 0
  %832 = vmatprep.subr.bf16.mxu0 0
  %833 = vmatpush2.bf16.msra.mxu0 0
  %834 = vmatprep.subr.bf16.mxu0 0
  %835 = vmatpush2.bf16.msra.mxu0 0
  %836 = vmatprep.subr.bf16.mxu0 0
  %837 = vmatpush2.bf16.msra.mxu0 0
  %838 = vmatprep.subr.bf16.mxu0 0
  %839 = vmatpush2.bf16.msra.mxu0 0
  %840 = vmatprep.subr.bf16.mxu0 0
  %841 = vmatpush2.bf16.msra.mxu0 0
  %842 = vmatprep.subr.bf16.mxu0 0
  %843 = vmatpush2.bf16.msra.mxu0 0
  %844 = vmatprep.subr.bf16.mxu0 0
  %845 = vmatpush2.bf16.msra.mxu0 0
  %846 = vmatprep.mubr.bf16.mxu0 0
  %847 = vmatmul.mubr.bf16.gmra.mxu0 %v791
  %v848 = vpop.f32.mrf.mxu0
  %v849 = vadd.f32 0.0, %v848
  %v850 = vpop.f32.mrf.mxu0
  %v851 = vpop.f32.mrf.mxu0
  %v852 = vadd.f32 0.0, %v851
  %v853 = vpop.f32.mrf.mxu0
  %854 = vmatprep.mubr.bf16.mxu0 0
  %855 = vmatmul.mubr.bf16.gmra.mxu0 %v794
  %v856 = vpop.f32.mrf.mxu0
  %v857 = vadd.f32 0.0, %v856
  %v858 = vpop.f32.mrf.mxu0
  %v859 = vpop.f32.mrf.mxu0
  %v860 = vadd.f32 0.0, %v859
  %v861 = vpop.f32.mrf.mxu0
  %862 = vmatprep.mubr.bf16.mxu0 0
  %863 = vmatmul.mubr.bf16.gmra.mxu0 %v797
  %v864 = vpop.f32.mrf.mxu0
  %v865 = vadd.f32 0.0, %v864
  %v866 = vpop.f32.mrf.mxu0
  %v867 = vpop.f32.mrf.mxu0
  %v868 = vadd.f32 0.0, %v867
  %v869 = vpop.f32.mrf.mxu0
  %870 = vmatprep.mubr.bf16.mxu0 0
  %871 = vmatmul.mubr.bf16.gmra.mxu0 %v800
  %v872 = vpop.f32.mrf.mxu0
  %v873 = vadd.f32 0.0, %v872
  %v874 = vpop.f32.mrf.mxu0
  %v875 = vpop.f32.mrf.mxu0
  %v876 = vadd.f32 0.0, %v875
  %v877 = vpop.f32.mrf.mxu0
  %878 = vmatprep.mubr.bf16.mxu0 0
  %879 = vmatmul.mubr.bf16.gmra.mxu0 %v803
  %v880 = vpop.f32.mrf.mxu0
  %v881 = vadd.f32 0.0, %v880
  %v882 = vpop.f32.mrf.mxu0
  %v883 = vpop.f32.mrf.mxu0
  %v884 = vadd.f32 0.0, %v883
  %v885 = vpop.f32.mrf.mxu0
  %886 = vmatprep.mubr.bf16.mxu0 0
  %887 = vmatmul.mubr.bf16.gmra.mxu0 %v806
  %v888 = vpop.f32.mrf.mxu0
  %v889 = vadd.f32 0.0, %v888
  %v890 = vpop.f32.mrf.mxu0
  %v891 = vpop.f32.mrf.mxu0
  %v892 = vadd.f32 0.0, %v891
  %v893 = vpop.f32.mrf.mxu0
  %894 = vmatprep.mubr.bf16.mxu0 0
  %895 = vmatmul.mubr.bf16.gmra.mxu0 %v809
  %v896 = vpop.f32.mrf.mxu0
  %v897 = vadd.f32 0.0, %v896
  %v898 = vpop.f32.mrf.mxu0
  %v899 = vpop.f32.mrf.mxu0
  %v900 = vadd.f32 0.0, %v899
  %v901 = vpop.f32.mrf.mxu0
  %902 = vmatprep.mubr.bf16.mxu0 0
  %903 = vmatmul.mubr.bf16.gmra.mxu0 %v812
  %v904 = vpop.f32.mrf.mxu0
  %v905 = vadd.f32 0.0, %v904
  %v906 = vpop.f32.mrf.mxu0
  %v907 = vpop.f32.mrf.mxu0
  %v908 = vadd.f32 0.0, %v907
  %v909 = vpop.f32.mrf.mxu0
  %910 = vdwg.mxu0
  %v911 = vunpack.c.l.bf16 %v734
  %v912 = vunpack.c.l.bf16 %v735
  %v913 = vunpack.c.l.bf16 %v736
  %v914 = vunpack.c.l.bf16 %v737
  %v915 = vunpack.c.l.bf16 %v738
  %v916 = vunpack.c.l.bf16 %v739
  %v917 = vunpack.c.l.bf16 %v740
  %v918 = vunpack.c.l.bf16 %v741
  %v919 = vunpack.c.l.bf16 %v742
  %v920 = vunpack.c.l.bf16 %v743
  %v921 = vunpack.c.l.bf16 %v744
  %v922 = vunpack.c.l.bf16 %v745
  %v923 = vunpack.c.l.bf16 %v746
  %v924 = vunpack.c.l.bf16 %v747
  %v925 = vunpack.c.l.bf16 %v748
  %v926 = vunpack.c.l.bf16 %v749
  %v927 = vmul.f32 %v911, %v23
  %v928 = vmul.f32 %v912, %v24
  %v929 = vmul.f32 %v913, %v25
  %v930 = vmul.f32 %v914, %v26
  %v931 = vmul.f32 %v915, %v27
  %v932 = vmul.f32 %v916, %v28
  %v933 = vmul.f32 %v917, %v29
  %v934 = vmul.f32 %v918, %v30
  %v935 = vmul.f32 %v919, %v31
  %v936 = vmul.f32 %v920, %v32
  %v937 = vmul.f32 %v921, %v33
  %v938 = vmul.f32 %v922, %v34
  %v939 = vmul.f32 %v923, %v35
  %v940 = vmul.f32 %v924, %v36
  %v941 = vmul.f32 %v925, %v37
  %v942 = vmul.f32 %v926, %v38
  %v943 = vmul.f32 %v849, %v39
  %v944 = vmul.f32 %v852, %v40
  %v945 = vmul.f32 %v857, %v41
  %v946 = vmul.f32 %v860, %v42
  %v947 = vmul.f32 %v865, %v43
  %v948 = vmul.f32 %v868, %v44
  %v949 = vmul.f32 %v873, %v45
  %v950 = vmul.f32 %v876, %v46
  %v951 = vmul.f32 %v881, %v47
  %v952 = vmul.f32 %v884, %v48
  %v953 = vmul.f32 %v889, %v49
  %v954 = vmul.f32 %v892, %v50
  %v955 = vmul.f32 %v897, %v51
  %v956 = vmul.f32 %v900, %v52
  %v957 = vmul.f32 %v905, %v53
  %v958 = vmul.f32 %v908, %v54
  %v959 = vadd.f32 %v927, %v943
  %v960 = vadd.f32 %v928, %v944
  %v961 = vadd.f32 %v929, %v945
  %v962 = vadd.f32 %v930, %v946
  %v963 = vadd.f32 %v931, %v947
  %v964 = vadd.f32 %v932, %v948
  %v965 = vadd.f32 %v933, %v949
  %v966 = vadd.f32 %v934, %v950
  %v967 = vadd.f32 %v935, %v951
  %v968 = vadd.f32 %v936, %v952
  %v969 = vadd.f32 %v937, %v953
  %v970 = vadd.f32 %v938, %v954
  %v971 = vadd.f32 %v939, %v955
  %v972 = vadd.f32 %v940, %v956
  %v973 = vadd.f32 %v941, %v957
  %v974 = vadd.f32 %v942, %v958
  %v975 = vpack.c.bf16 %v960, %v959
  %v976 = vpack.c.bf16 %v962, %v961
  %v977 = vpack.c.bf16 %v964, %v963
  %v978 = vpack.c.bf16 %v966, %v965
  %v979 = vpack.c.bf16 %v968, %v967
  %v980 = vpack.c.bf16 %v970, %v969
  %v981 = vpack.c.bf16 %v972, %v971
  %v982 = vpack.c.bf16 %v974, %v973
  %v991 = vunpack.c.l.b16 %v975
  %v992 = vunpack.c.h.b16 %v975
  %v993 = vunpack.c.l.b16 %v976
  %v994 = vunpack.c.h.b16 %v976
  %v995 = vunpack.c.l.b16 %v977
  %v996 = vunpack.c.h.b16 %v977
  %v997 = vunpack.c.l.b16 %v978
  %v998 = vunpack.c.h.b16 %v978
  %v999 = vunpack.c.l.b16 %v979
  %v1000 = vunpack.c.h.b16 %v979
  %v1001 = vunpack.c.l.b16 %v980
  %v1002 = vunpack.c.h.b16 %v980
  %v1003 = vunpack.c.l.b16 %v981
  %v1004 = vunpack.c.h.b16 %v981
  %v1005 = vunpack.c.l.b16 %v982
  %v1006 = vunpack.c.h.b16 %v982
  %v1007 = vpack.c.b16 %v991, %v991
  %v1008 = vpack.c.b16 %v992, %v992
  %v1009 = vpack.c.b16 %v993, %v993
  %v1010 = vpack.c.b16 %v994, %v994
  %v1011 = vpack.c.b16 %v995, %v995
  %v1012 = vpack.c.b16 %v996, %v996
  %v1013 = vpack.c.b16 %v997, %v997
  %v1014 = vpack.c.b16 %v998, %v998
  %v1015 = vpack.c.b16 %v999, %v999
  %v1016 = vpack.c.b16 %v1000, %v1000
  %v1017 = vpack.c.b16 %v1001, %v1001
  %v1018 = vpack.c.b16 %v1002, %v1002
  %v1019 = vpack.c.b16 %v1003, %v1003
  %v1020 = vpack.c.b16 %v1004, %v1004
  %v1021 = vpack.c.b16 %v1005, %v1005
  %v1022 = vpack.c.b16 %v1006, %v1006
  %s1039 = scalar_lea.vmem %s5, 128
  %1040 = vst.msk [vmem:[%s1039] sm:$0xf] %vm393, %v1007
  %1041 = vst.msk [vmem:[%s1039 + $0x4] sm:$0xf] %vm393, %v1008
  %1042 = vst.msk [vmem:[%s1039 + $0x8] sm:$0xf] %vm393, %v1009
  %1043 = vst.msk [vmem:[%s1039 + $0xc] sm:$0xf] %vm393, %v1010
  %1044 = vst.msk [vmem:[%s1039 + $0x10] sm:$0xf] %vm393, %v1011
  %1045 = vst.msk [vmem:[%s1039 + $0x14] sm:$0xf] %vm393, %v1012
  %1046 = vst.msk [vmem:[%s1039 + $0x18] sm:$0xf] %vm393, %v1013
  %1047 = vst.msk [vmem:[%s1039 + $0x1c] sm:$0xf] %vm393, %v1014
  %1048 = vst.msk [vmem:[%s1039 + $0x20] sm:$0xf] %vm393, %v1015
  %1049 = vst.msk [vmem:[%s1039 + $0x24] sm:$0xf] %vm393, %v1016
  %1050 = vst.msk [vmem:[%s1039 + $0x28] sm:$0xf] %vm393, %v1017
  %1051 = vst.msk [vmem:[%s1039 + $0x2c] sm:$0xf] %vm393, %v1018
  %1052 = vst.msk [vmem:[%s1039 + $0x30] sm:$0xf] %vm393, %v1019
  %1053 = vst.msk [vmem:[%s1039 + $0x34] sm:$0xf] %vm393, %v1020
  %1054 = vst.msk [vmem:[%s1039 + $0x38] sm:$0xf] %vm393, %v1021
  %1055 = vst.msk [vmem:[%s1039 + $0x3c] sm:$0xf] %vm393, %v1022
  %s1056 = scalar_lea.vmem %s3, 192
  %v1057 = vld [vmem:[%s1056] sm:$0xf]
  %v1058 = vld [vmem:[%s1056 + $0x4] sm:$0xf]
  %v1059 = vld [vmem:[%s1056 + $0x8] sm:$0xf]
  %v1060 = vld [vmem:[%s1056 + $0xc] sm:$0xf]
  %v1061 = vld [vmem:[%s1056 + $0x10] sm:$0xf]
  %v1062 = vld [vmem:[%s1056 + $0x14] sm:$0xf]
  %v1063 = vld [vmem:[%s1056 + $0x18] sm:$0xf]
  %v1064 = vld [vmem:[%s1056 + $0x1c] sm:$0xf]
  %v1065 = vld [vmem:[%s1056 + $0x20] sm:$0xf]
  %v1066 = vld [vmem:[%s1056 + $0x24] sm:$0xf]
  %v1067 = vld [vmem:[%s1056 + $0x28] sm:$0xf]
  %v1068 = vld [vmem:[%s1056 + $0x2c] sm:$0xf]
  %v1069 = vld [vmem:[%s1056 + $0x30] sm:$0xf]
  %v1070 = vld [vmem:[%s1056 + $0x34] sm:$0xf]
  %v1071 = vld [vmem:[%s1056 + $0x38] sm:$0xf]
  %v1072 = vld [vmem:[%s1056 + $0x3c] sm:$0xf]
  %v1089 = vunpack.c.l.b16 %v1057
  %v1090 = vunpack.c.l.b16 %v1058
  %v1091 = vunpack.c.l.b16 %v1059
  %v1092 = vunpack.c.l.b16 %v1060
  %v1093 = vunpack.c.l.b16 %v1061
  %v1094 = vunpack.c.l.b16 %v1062
  %v1095 = vunpack.c.l.b16 %v1063
  %v1096 = vunpack.c.l.b16 %v1064
  %v1097 = vunpack.c.l.b16 %v1065
  %v1098 = vunpack.c.l.b16 %v1066
  %v1099 = vunpack.c.l.b16 %v1067
  %v1100 = vunpack.c.l.b16 %v1068
  %v1101 = vunpack.c.l.b16 %v1069
  %v1102 = vunpack.c.l.b16 %v1070
  %v1103 = vunpack.c.l.b16 %v1071
  %v1104 = vunpack.c.l.b16 %v1072
  %v1105 = vpack.c.b16 %v1090, %v1089
  %v1106 = vpack.c.b16 %v1092, %v1091
  %v1107 = vpack.c.b16 %v1094, %v1093
  %v1108 = vpack.c.b16 %v1096, %v1095
  %v1109 = vpack.c.b16 %v1098, %v1097
  %v1110 = vpack.c.b16 %v1100, %v1099
  %v1111 = vpack.c.b16 %v1102, %v1101
  %v1112 = vpack.c.b16 %v1104, %v1103
  %v1114 = vsel %vm143, %v1105, 0
  %v1117 = vsel %vm143, %v1106, 0
  %v1120 = vsel %vm143, %v1107, 0
  %v1123 = vsel %vm143, %v1108, 0
  %v1126 = vsel %vm143, %v1109, 0
  %v1129 = vsel %vm143, %v1110, 0
  %v1132 = vsel %vm143, %v1111, 0
  %v1135 = vsel %vm143, %v1112, 0
  %1137 = vmatprep.subr.bf16.mxu0 0
  %1138 = vmatpush1.bf16.msra.mxu0 0
  %1139 = vmatprep.subr.bf16.mxu0 0
  %1140 = vmatpush1.bf16.msra.mxu0 0
  %1141 = vmatprep.subr.bf16.mxu0 0
  %1142 = vmatpush1.bf16.msra.mxu0 0
  %1143 = vmatprep.subr.bf16.mxu0 0
  %1144 = vmatpush1.bf16.msra.mxu0 0
  %1145 = vmatprep.subr.bf16.mxu0 0
  %1146 = vmatpush1.bf16.msra.mxu0 %v138
  %1147 = vmatprep.subr.bf16.mxu0 0
  %1148 = vmatpush1.bf16.msra.mxu0 %v137
  %1149 = vmatprep.subr.bf16.mxu0 0
  %1150 = vmatpush1.bf16.msra.mxu0 %v136
  %1151 = vmatprep.subr.bf16.mxu0 0
  %1152 = vmatpush1.bf16.msra.mxu0 %v135
  %1153 = vmatprep.subr.bf16.mxu0 0
  %1154 = vmatpush2.bf16.msra.mxu0 0
  %1155 = vmatprep.subr.bf16.mxu0 0
  %1156 = vmatpush2.bf16.msra.mxu0 0
  %1157 = vmatprep.subr.bf16.mxu0 0
  %1158 = vmatpush2.bf16.msra.mxu0 0
  %1159 = vmatprep.subr.bf16.mxu0 0
  %1160 = vmatpush2.bf16.msra.mxu0 0
  %1161 = vmatprep.subr.bf16.mxu0 0
  %1162 = vmatpush2.bf16.msra.mxu0 0
  %1163 = vmatprep.subr.bf16.mxu0 0
  %1164 = vmatpush2.bf16.msra.mxu0 0
  %1165 = vmatprep.subr.bf16.mxu0 0
  %1166 = vmatpush2.bf16.msra.mxu0 0
  %1167 = vmatprep.subr.bf16.mxu0 0
  %1168 = vmatpush2.bf16.msra.mxu0 0
  %1169 = vmatprep.mubr.bf16.mxu0 0
  %1170 = vmatmul.mubr.bf16.gmra.mxu0 %v1114
  %v1171 = vpop.f32.mrf.mxu0
  %v1172 = vadd.f32 0.0, %v1171
  %v1173 = vpop.f32.mrf.mxu0
  %v1174 = vpop.f32.mrf.mxu0
  %v1175 = vadd.f32 0.0, %v1174
  %v1176 = vpop.f32.mrf.mxu0
  %1177 = vmatprep.mubr.bf16.mxu0 0
  %1178 = vmatmul.mubr.bf16.gmra.mxu0 %v1117
  %v1179 = vpop.f32.mrf.mxu0
  %v1180 = vadd.f32 0.0, %v1179
  %v1181 = vpop.f32.mrf.mxu0
  %v1182 = vpop.f32.mrf.mxu0
  %v1183 = vadd.f32 0.0, %v1182
  %v1184 = vpop.f32.mrf.mxu0
  %1185 = vmatprep.mubr.bf16.mxu0 0
  %1186 = vmatmul.mubr.bf16.gmra.mxu0 %v1120
  %v1187 = vpop.f32.mrf.mxu0
  %v1188 = vadd.f32 0.0, %v1187
  %v1189 = vpop.f32.mrf.mxu0
  %v1190 = vpop.f32.mrf.mxu0
  %v1191 = vadd.f32 0.0, %v1190
  %v1192 = vpop.f32.mrf.mxu0
  %1193 = vmatprep.mubr.bf16.mxu0 0
  %1194 = vmatmul.mubr.bf16.gmra.mxu0 %v1123
  %v1195 = vpop.f32.mrf.mxu0
  %v1196 = vadd.f32 0.0, %v1195
  %v1197 = vpop.f32.mrf.mxu0
  %v1198 = vpop.f32.mrf.mxu0
  %v1199 = vadd.f32 0.0, %v1198
  %v1200 = vpop.f32.mrf.mxu0
  %1201 = vmatprep.mubr.bf16.mxu0 0
  %1202 = vmatmul.mubr.bf16.gmra.mxu0 %v1126
  %v1203 = vpop.f32.mrf.mxu0
  %v1204 = vadd.f32 0.0, %v1203
  %v1205 = vpop.f32.mrf.mxu0
  %v1206 = vpop.f32.mrf.mxu0
  %v1207 = vadd.f32 0.0, %v1206
  %v1208 = vpop.f32.mrf.mxu0
  %1209 = vmatprep.mubr.bf16.mxu0 0
  %1210 = vmatmul.mubr.bf16.gmra.mxu0 %v1129
  %v1211 = vpop.f32.mrf.mxu0
  %v1212 = vadd.f32 0.0, %v1211
  %v1213 = vpop.f32.mrf.mxu0
  %v1214 = vpop.f32.mrf.mxu0
  %v1215 = vadd.f32 0.0, %v1214
  %v1216 = vpop.f32.mrf.mxu0
  %1217 = vmatprep.mubr.bf16.mxu0 0
  %1218 = vmatmul.mubr.bf16.gmra.mxu0 %v1132
  %v1219 = vpop.f32.mrf.mxu0
  %v1220 = vadd.f32 0.0, %v1219
  %v1221 = vpop.f32.mrf.mxu0
  %v1222 = vpop.f32.mrf.mxu0
  %v1223 = vadd.f32 0.0, %v1222
  %v1224 = vpop.f32.mrf.mxu0
  %1225 = vmatprep.mubr.bf16.mxu0 0
  %1226 = vmatmul.mubr.bf16.gmra.mxu0 %v1135
  %v1227 = vpop.f32.mrf.mxu0
  %v1228 = vadd.f32 0.0, %v1227
  %v1229 = vpop.f32.mrf.mxu0
  %v1230 = vpop.f32.mrf.mxu0
  %v1231 = vadd.f32 0.0, %v1230
  %v1232 = vpop.f32.mrf.mxu0
  %1233 = vdwg.mxu0
  %v1234 = vunpack.c.l.bf16 %v1057
  %v1235 = vunpack.c.l.bf16 %v1058
  %v1236 = vunpack.c.l.bf16 %v1059
  %v1237 = vunpack.c.l.bf16 %v1060
  %v1238 = vunpack.c.l.bf16 %v1061
  %v1239 = vunpack.c.l.bf16 %v1062
  %v1240 = vunpack.c.l.bf16 %v1063
  %v1241 = vunpack.c.l.bf16 %v1064
  %v1242 = vunpack.c.l.bf16 %v1065
  %v1243 = vunpack.c.l.bf16 %v1066
  %v1244 = vunpack.c.l.bf16 %v1067
  %v1245 = vunpack.c.l.bf16 %v1068
  %v1246 = vunpack.c.l.bf16 %v1069
  %v1247 = vunpack.c.l.bf16 %v1070
  %v1248 = vunpack.c.l.bf16 %v1071
  %v1249 = vunpack.c.l.bf16 %v1072
  %v1250 = vmul.f32 %v1234, %v23
  %v1251 = vmul.f32 %v1235, %v24
  %v1252 = vmul.f32 %v1236, %v25
  %v1253 = vmul.f32 %v1237, %v26
  %v1254 = vmul.f32 %v1238, %v27
  %v1255 = vmul.f32 %v1239, %v28
  %v1256 = vmul.f32 %v1240, %v29
  %v1257 = vmul.f32 %v1241, %v30
  %v1258 = vmul.f32 %v1242, %v31
  %v1259 = vmul.f32 %v1243, %v32
  %v1260 = vmul.f32 %v1244, %v33
  %v1261 = vmul.f32 %v1245, %v34
  %v1262 = vmul.f32 %v1246, %v35
  %v1263 = vmul.f32 %v1247, %v36
  %v1264 = vmul.f32 %v1248, %v37
  %v1265 = vmul.f32 %v1249, %v38
  %v1266 = vmul.f32 %v1172, %v39
  %v1267 = vmul.f32 %v1175, %v40
  %v1268 = vmul.f32 %v1180, %v41
  %v1269 = vmul.f32 %v1183, %v42
  %v1270 = vmul.f32 %v1188, %v43
  %v1271 = vmul.f32 %v1191, %v44
  %v1272 = vmul.f32 %v1196, %v45
  %v1273 = vmul.f32 %v1199, %v46
  %v1274 = vmul.f32 %v1204, %v47
  %v1275 = vmul.f32 %v1207, %v48
  %v1276 = vmul.f32 %v1212, %v49
  %v1277 = vmul.f32 %v1215, %v50
  %v1278 = vmul.f32 %v1220, %v51
  %v1279 = vmul.f32 %v1223, %v52
  %v1280 = vmul.f32 %v1228, %v53
  %v1281 = vmul.f32 %v1231, %v54
  %v1282 = vadd.f32 %v1250, %v1266
  %v1283 = vadd.f32 %v1251, %v1267
  %v1284 = vadd.f32 %v1252, %v1268
  %v1285 = vadd.f32 %v1253, %v1269
  %v1286 = vadd.f32 %v1254, %v1270
  %v1287 = vadd.f32 %v1255, %v1271
  %v1288 = vadd.f32 %v1256, %v1272
  %v1289 = vadd.f32 %v1257, %v1273
  %v1290 = vadd.f32 %v1258, %v1274
  %v1291 = vadd.f32 %v1259, %v1275
  %v1292 = vadd.f32 %v1260, %v1276
  %v1293 = vadd.f32 %v1261, %v1277
  %v1294 = vadd.f32 %v1262, %v1278
  %v1295 = vadd.f32 %v1263, %v1279
  %v1296 = vadd.f32 %v1264, %v1280
  %v1297 = vadd.f32 %v1265, %v1281
  %v1298 = vpack.c.bf16 %v1283, %v1282
  %v1299 = vpack.c.bf16 %v1285, %v1284
  %v1300 = vpack.c.bf16 %v1287, %v1286
  %v1301 = vpack.c.bf16 %v1289, %v1288
  %v1302 = vpack.c.bf16 %v1291, %v1290
  %v1303 = vpack.c.bf16 %v1293, %v1292
  %v1304 = vpack.c.bf16 %v1295, %v1294
  %v1305 = vpack.c.bf16 %v1297, %v1296
  %v1314 = vunpack.c.l.b16 %v1298
  %v1315 = vunpack.c.h.b16 %v1298
  %v1316 = vunpack.c.l.b16 %v1299
  %v1317 = vunpack.c.h.b16 %v1299
  %v1318 = vunpack.c.l.b16 %v1300
  %v1319 = vunpack.c.h.b16 %v1300
  %v1320 = vunpack.c.l.b16 %v1301
  %v1321 = vunpack.c.h.b16 %v1301
  %v1322 = vunpack.c.l.b16 %v1302
  %v1323 = vunpack.c.h.b16 %v1302
  %v1324 = vunpack.c.l.b16 %v1303
  %v1325 = vunpack.c.h.b16 %v1303
  %v1326 = vunpack.c.l.b16 %v1304
  %v1327 = vunpack.c.h.b16 %v1304
  %v1328 = vunpack.c.l.b16 %v1305
  %v1329 = vunpack.c.h.b16 %v1305
  %v1330 = vpack.c.b16 %v1314, %v1314
  %v1331 = vpack.c.b16 %v1315, %v1315
  %v1332 = vpack.c.b16 %v1316, %v1316
  %v1333 = vpack.c.b16 %v1317, %v1317
  %v1334 = vpack.c.b16 %v1318, %v1318
  %v1335 = vpack.c.b16 %v1319, %v1319
  %v1336 = vpack.c.b16 %v1320, %v1320
  %v1337 = vpack.c.b16 %v1321, %v1321
  %v1338 = vpack.c.b16 %v1322, %v1322
  %v1339 = vpack.c.b16 %v1323, %v1323
  %v1340 = vpack.c.b16 %v1324, %v1324
  %v1341 = vpack.c.b16 %v1325, %v1325
  %v1342 = vpack.c.b16 %v1326, %v1326
  %v1343 = vpack.c.b16 %v1327, %v1327
  %v1344 = vpack.c.b16 %v1328, %v1328
  %v1345 = vpack.c.b16 %v1329, %v1329
  %s1362 = scalar_lea.vmem %s5, 192
  %1363 = vst.msk [vmem:[%s1362] sm:$0xf] %vm393, %v1330
  %1364 = vst.msk [vmem:[%s1362 + $0x4] sm:$0xf] %vm393, %v1331
  %1365 = vst.msk [vmem:[%s1362 + $0x8] sm:$0xf] %vm393, %v1332
  %1366 = vst.msk [vmem:[%s1362 + $0xc] sm:$0xf] %vm393, %v1333
  %1367 = vst.msk [vmem:[%s1362 + $0x10] sm:$0xf] %vm393, %v1334
  %1368 = vst.msk [vmem:[%s1362 + $0x14] sm:$0xf] %vm393, %v1335
  %1369 = vst.msk [vmem:[%s1362 + $0x18] sm:$0xf] %vm393, %v1336
  %1370 = vst.msk [vmem:[%s1362 + $0x1c] sm:$0xf] %vm393, %v1337
  %1371 = vst.msk [vmem:[%s1362 + $0x20] sm:$0xf] %vm393, %v1338
  %1372 = vst.msk [vmem:[%s1362 + $0x24] sm:$0xf] %vm393, %v1339
  %1373 = vst.msk [vmem:[%s1362 + $0x28] sm:$0xf] %vm393, %v1340
  %1374 = vst.msk [vmem:[%s1362 + $0x2c] sm:$0xf] %vm393, %v1341
  %1375 = vst.msk [vmem:[%s1362 + $0x30] sm:$0xf] %vm393, %v1342
  %1376 = vst.msk [vmem:[%s1362 + $0x34] sm:$0xf] %vm393, %v1343
  %1377 = vst.msk [vmem:[%s1362 + $0x38] sm:$0xf] %vm393, %v1344
  %1378 = vst.msk [vmem:[%s1362 + $0x3c] sm:$0xf] %vm393, %v1345
  %v1379 = vld [vmem:[%s4] sm:$0xf]
  %v1380 = vld [vmem:[%s4 + $0x4] sm:$0xf]
  %v1381 = vld [vmem:[%s4 + $0x8] sm:$0xf]
  %v1382 = vld [vmem:[%s4 + $0xc] sm:$0xf]
  %v1383 = vld [vmem:[%s4 + $0x10] sm:$0xf]
  %v1384 = vld [vmem:[%s4 + $0x14] sm:$0xf]
  %v1385 = vld [vmem:[%s4 + $0x18] sm:$0xf]
  %v1386 = vld [vmem:[%s4 + $0x1c] sm:$0xf]
  %v1387 = vld [vmem:[%s4 + $0x20] sm:$0xf]
  %v1388 = vld [vmem:[%s4 + $0x24] sm:$0xf]
  %v1389 = vld [vmem:[%s4 + $0x28] sm:$0xf]
  %v1390 = vld [vmem:[%s4 + $0x2c] sm:$0xf]
  %v1391 = vld [vmem:[%s4 + $0x30] sm:$0xf]
  %v1392 = vld [vmem:[%s4 + $0x34] sm:$0xf]
  %v1393 = vld [vmem:[%s4 + $0x38] sm:$0xf]
  %v1394 = vld [vmem:[%s4 + $0x3c] sm:$0xf]
  %v1411 = vunpack.c.l.b16 %v1379
  %v1412 = vunpack.c.l.b16 %v1380
  %v1413 = vunpack.c.l.b16 %v1381
  %v1414 = vunpack.c.l.b16 %v1382
  %v1415 = vunpack.c.l.b16 %v1383
  %v1416 = vunpack.c.l.b16 %v1384
  %v1417 = vunpack.c.l.b16 %v1385
  %v1418 = vunpack.c.l.b16 %v1386
  %v1419 = vunpack.c.l.b16 %v1387
  %v1420 = vunpack.c.l.b16 %v1388
  %v1421 = vunpack.c.l.b16 %v1389
  %v1422 = vunpack.c.l.b16 %v1390
  %v1423 = vunpack.c.l.b16 %v1391
  %v1424 = vunpack.c.l.b16 %v1392
  %v1425 = vunpack.c.l.b16 %v1393
  %v1426 = vunpack.c.l.b16 %v1394
  %v1427 = vpack.c.b16 %v1412, %v1411
  %v1428 = vpack.c.b16 %v1414, %v1413
  %v1429 = vpack.c.b16 %v1416, %v1415
  %v1430 = vpack.c.b16 %v1418, %v1417
  %v1431 = vpack.c.b16 %v1420, %v1419
  %v1432 = vpack.c.b16 %v1422, %v1421
  %v1433 = vpack.c.b16 %v1424, %v1423
  %v1434 = vpack.c.b16 %v1426, %v1425
  %v1436 = vsel %vm143, %v1427, 0
  %v1439 = vsel %vm143, %v1428, 0
  %v1442 = vsel %vm143, %v1429, 0
  %v1445 = vsel %vm143, %v1430, 0
  %v1448 = vsel %vm143, %v1431, 0
  %v1451 = vsel %vm143, %v1432, 0
  %v1454 = vsel %vm143, %v1433, 0
  %v1457 = vsel %vm143, %v1434, 0
  %1459 = vmatprep.subr.bf16.mxu0 0
  %1460 = vmatpush1.bf16.msra.mxu0 0
  %1461 = vmatprep.subr.bf16.mxu0 0
  %1462 = vmatpush1.bf16.msra.mxu0 0
  %1463 = vmatprep.subr.bf16.mxu0 0
  %1464 = vmatpush1.bf16.msra.mxu0 0
  %1465 = vmatprep.subr.bf16.mxu0 0
  %1466 = vmatpush1.bf16.msra.mxu0 0
  %1467 = vmatprep.subr.bf16.mxu0 0
  %1468 = vmatpush1.bf16.msra.mxu0 %v138
  %1469 = vmatprep.subr.bf16.mxu0 0
  %1470 = vmatpush1.bf16.msra.mxu0 %v137
  %1471 = vmatprep.subr.bf16.mxu0 0
  %1472 = vmatpush1.bf16.msra.mxu0 %v136
  %1473 = vmatprep.subr.bf16.mxu0 0
  %1474 = vmatpush1.bf16.msra.mxu0 %v135
  %1475 = vmatprep.subr.bf16.mxu0 0
  %1476 = vmatpush2.bf16.msra.mxu0 0
  %1477 = vmatprep.subr.bf16.mxu0 0
  %1478 = vmatpush2.bf16.msra.mxu0 0
  %1479 = vmatprep.subr.bf16.mxu0 0
  %1480 = vmatpush2.bf16.msra.mxu0 0
  %1481 = vmatprep.subr.bf16.mxu0 0
  %1482 = vmatpush2.bf16.msra.mxu0 0
  %1483 = vmatprep.subr.bf16.mxu0 0
  %1484 = vmatpush2.bf16.msra.mxu0 0
  %1485 = vmatprep.subr.bf16.mxu0 0
  %1486 = vmatpush2.bf16.msra.mxu0 0
  %1487 = vmatprep.subr.bf16.mxu0 0
  %1488 = vmatpush2.bf16.msra.mxu0 0
  %1489 = vmatprep.subr.bf16.mxu0 0
  %1490 = vmatpush2.bf16.msra.mxu0 0
  %1491 = vmatprep.mubr.bf16.mxu0 0
  %1492 = vmatmul.mubr.bf16.gmra.mxu0 %v1436
  %v1493 = vpop.f32.mrf.mxu0
  %v1494 = vadd.f32 0.0, %v1493
  %v1495 = vpop.f32.mrf.mxu0
  %v1496 = vpop.f32.mrf.mxu0
  %v1497 = vadd.f32 0.0, %v1496
  %v1498 = vpop.f32.mrf.mxu0
  %1499 = vmatprep.mubr.bf16.mxu0 0
  %1500 = vmatmul.mubr.bf16.gmra.mxu0 %v1439
  %v1501 = vpop.f32.mrf.mxu0
  %v1502 = vadd.f32 0.0, %v1501
  %v1503 = vpop.f32.mrf.mxu0
  %v1504 = vpop.f32.mrf.mxu0
  %v1505 = vadd.f32 0.0, %v1504
  %v1506 = vpop.f32.mrf.mxu0
  %1507 = vmatprep.mubr.bf16.mxu0 0
  %1508 = vmatmul.mubr.bf16.gmra.mxu0 %v1442
  %v1509 = vpop.f32.mrf.mxu0
  %v1510 = vadd.f32 0.0, %v1509
  %v1511 = vpop.f32.mrf.mxu0
  %v1512 = vpop.f32.mrf.mxu0
  %v1513 = vadd.f32 0.0, %v1512
  %v1514 = vpop.f32.mrf.mxu0
  %1515 = vmatprep.mubr.bf16.mxu0 0
  %1516 = vmatmul.mubr.bf16.gmra.mxu0 %v1445
  %v1517 = vpop.f32.mrf.mxu0
  %v1518 = vadd.f32 0.0, %v1517
  %v1519 = vpop.f32.mrf.mxu0
  %v1520 = vpop.f32.mrf.mxu0
  %v1521 = vadd.f32 0.0, %v1520
  %v1522 = vpop.f32.mrf.mxu0
  %1523 = vmatprep.mubr.bf16.mxu0 0
  %1524 = vmatmul.mubr.bf16.gmra.mxu0 %v1448
  %v1525 = vpop.f32.mrf.mxu0
  %v1526 = vadd.f32 0.0, %v1525
  %v1527 = vpop.f32.mrf.mxu0
  %v1528 = vpop.f32.mrf.mxu0
  %v1529 = vadd.f32 0.0, %v1528
  %v1530 = vpop.f32.mrf.mxu0
  %1531 = vmatprep.mubr.bf16.mxu0 0
  %1532 = vmatmul.mubr.bf16.gmra.mxu0 %v1451
  %v1533 = vpop.f32.mrf.mxu0
  %v1534 = vadd.f32 0.0, %v1533
  %v1535 = vpop.f32.mrf.mxu0
  %v1536 = vpop.f32.mrf.mxu0
  %v1537 = vadd.f32 0.0, %v1536
  %v1538 = vpop.f32.mrf.mxu0
  %1539 = vmatprep.mubr.bf16.mxu0 0
  %1540 = vmatmul.mubr.bf16.gmra.mxu0 %v1454
  %v1541 = vpop.f32.mrf.mxu0
  %v1542 = vadd.f32 0.0, %v1541
  %v1543 = vpop.f32.mrf.mxu0
  %v1544 = vpop.f32.mrf.mxu0
  %v1545 = vadd.f32 0.0, %v1544
  %v1546 = vpop.f32.mrf.mxu0
  %1547 = vmatprep.mubr.bf16.mxu0 0
  %1548 = vmatmul.mubr.bf16.gmra.mxu0 %v1457
  %v1549 = vpop.f32.mrf.mxu0
  %v1550 = vadd.f32 0.0, %v1549
  %v1551 = vpop.f32.mrf.mxu0
  %v1552 = vpop.f32.mrf.mxu0
  %v1553 = vadd.f32 0.0, %v1552
  %v1554 = vpop.f32.mrf.mxu0
  %1555 = vdwg.mxu0
  %v1556 = vunpack.c.l.bf16 %v1379
  %v1557 = vunpack.c.l.bf16 %v1380
  %v1558 = vunpack.c.l.bf16 %v1381
  %v1559 = vunpack.c.l.bf16 %v1382
  %v1560 = vunpack.c.l.bf16 %v1383
  %v1561 = vunpack.c.l.bf16 %v1384
  %v1562 = vunpack.c.l.bf16 %v1385
  %v1563 = vunpack.c.l.bf16 %v1386
  %v1564 = vunpack.c.l.bf16 %v1387
  %v1565 = vunpack.c.l.bf16 %v1388
  %v1566 = vunpack.c.l.bf16 %v1389
  %v1567 = vunpack.c.l.bf16 %v1390
  %v1568 = vunpack.c.l.bf16 %v1391
  %v1569 = vunpack.c.l.bf16 %v1392
  %v1570 = vunpack.c.l.bf16 %v1393
  %v1571 = vunpack.c.l.bf16 %v1394
  %v1572 = vmul.f32 %v1556, %v23
  %v1573 = vmul.f32 %v1557, %v24
  %v1574 = vmul.f32 %v1558, %v25
  %v1575 = vmul.f32 %v1559, %v26
  %v1576 = vmul.f32 %v1560, %v27
  %v1577 = vmul.f32 %v1561, %v28
  %v1578 = vmul.f32 %v1562, %v29
  %v1579 = vmul.f32 %v1563, %v30
  %v1580 = vmul.f32 %v1564, %v31
  %v1581 = vmul.f32 %v1565, %v32
  %v1582 = vmul.f32 %v1566, %v33
  %v1583 = vmul.f32 %v1567, %v34
  %v1584 = vmul.f32 %v1568, %v35
  %v1585 = vmul.f32 %v1569, %v36
  %v1586 = vmul.f32 %v1570, %v37
  %v1587 = vmul.f32 %v1571, %v38
  %v1588 = vmul.f32 %v1494, %v39
  %v1589 = vmul.f32 %v1497, %v40
  %v1590 = vmul.f32 %v1502, %v41
  %v1591 = vmul.f32 %v1505, %v42
  %v1592 = vmul.f32 %v1510, %v43
  %v1593 = vmul.f32 %v1513, %v44
  %v1594 = vmul.f32 %v1518, %v45
  %v1595 = vmul.f32 %v1521, %v46
  %v1596 = vmul.f32 %v1526, %v47
  %v1597 = vmul.f32 %v1529, %v48
  %v1598 = vmul.f32 %v1534, %v49
  %v1599 = vmul.f32 %v1537, %v50
  %v1600 = vmul.f32 %v1542, %v51
  %v1601 = vmul.f32 %v1545, %v52
  %v1602 = vmul.f32 %v1550, %v53
  %v1603 = vmul.f32 %v1553, %v54
  %v1604 = vadd.f32 %v1572, %v1588
  %v1605 = vadd.f32 %v1573, %v1589
  %v1606 = vadd.f32 %v1574, %v1590
  %v1607 = vadd.f32 %v1575, %v1591
  %v1608 = vadd.f32 %v1576, %v1592
  %v1609 = vadd.f32 %v1577, %v1593
  %v1610 = vadd.f32 %v1578, %v1594
  %v1611 = vadd.f32 %v1579, %v1595
  %v1612 = vadd.f32 %v1580, %v1596
  %v1613 = vadd.f32 %v1581, %v1597
  %v1614 = vadd.f32 %v1582, %v1598
  %v1615 = vadd.f32 %v1583, %v1599
  %v1616 = vadd.f32 %v1584, %v1600
  %v1617 = vadd.f32 %v1585, %v1601
  %v1618 = vadd.f32 %v1586, %v1602
  %v1619 = vadd.f32 %v1587, %v1603
  %v1620 = vpack.c.bf16 %v1605, %v1604
  %v1621 = vpack.c.bf16 %v1607, %v1606
  %v1622 = vpack.c.bf16 %v1609, %v1608
  %v1623 = vpack.c.bf16 %v1611, %v1610
  %v1624 = vpack.c.bf16 %v1613, %v1612
  %v1625 = vpack.c.bf16 %v1615, %v1614
  %v1626 = vpack.c.bf16 %v1617, %v1616
  %v1627 = vpack.c.bf16 %v1619, %v1618
  %v1636 = vunpack.c.l.b16 %v1620
  %v1637 = vunpack.c.h.b16 %v1620
  %v1638 = vunpack.c.l.b16 %v1621
  %v1639 = vunpack.c.h.b16 %v1621
  %v1640 = vunpack.c.l.b16 %v1622
  %v1641 = vunpack.c.h.b16 %v1622
  %v1642 = vunpack.c.l.b16 %v1623
  %v1643 = vunpack.c.h.b16 %v1623
  %v1644 = vunpack.c.l.b16 %v1624
  %v1645 = vunpack.c.h.b16 %v1624
  %v1646 = vunpack.c.l.b16 %v1625
  %v1647 = vunpack.c.h.b16 %v1625
  %v1648 = vunpack.c.l.b16 %v1626
  %v1649 = vunpack.c.h.b16 %v1626
  %v1650 = vunpack.c.l.b16 %v1627
  %v1651 = vunpack.c.h.b16 %v1627
  %v1652 = vpack.c.b16 %v1636, %v1636
  %v1653 = vpack.c.b16 %v1637, %v1637
  %v1654 = vpack.c.b16 %v1638, %v1638
  %v1655 = vpack.c.b16 %v1639, %v1639
  %v1656 = vpack.c.b16 %v1640, %v1640
  %v1657 = vpack.c.b16 %v1641, %v1641
  %v1658 = vpack.c.b16 %v1642, %v1642
  %v1659 = vpack.c.b16 %v1643, %v1643
  %v1660 = vpack.c.b16 %v1644, %v1644
  %v1661 = vpack.c.b16 %v1645, %v1645
  %v1662 = vpack.c.b16 %v1646, %v1646
  %v1663 = vpack.c.b16 %v1647, %v1647
  %v1664 = vpack.c.b16 %v1648, %v1648
  %v1665 = vpack.c.b16 %v1649, %v1649
  %v1666 = vpack.c.b16 %v1650, %v1650
  %v1667 = vpack.c.b16 %v1651, %v1651
  %1684 = vst.msk [vmem:[%s6] sm:$0xf] %vm393, %v1652
  %1685 = vst.msk [vmem:[%s6 + $0x4] sm:$0xf] %vm393, %v1653
  %1686 = vst.msk [vmem:[%s6 + $0x8] sm:$0xf] %vm393, %v1654
  %1687 = vst.msk [vmem:[%s6 + $0xc] sm:$0xf] %vm393, %v1655
  %1688 = vst.msk [vmem:[%s6 + $0x10] sm:$0xf] %vm393, %v1656
  %1689 = vst.msk [vmem:[%s6 + $0x14] sm:$0xf] %vm393, %v1657
  %1690 = vst.msk [vmem:[%s6 + $0x18] sm:$0xf] %vm393, %v1658
  %1691 = vst.msk [vmem:[%s6 + $0x1c] sm:$0xf] %vm393, %v1659
  %1692 = vst.msk [vmem:[%s6 + $0x20] sm:$0xf] %vm393, %v1660
  %1693 = vst.msk [vmem:[%s6 + $0x24] sm:$0xf] %vm393, %v1661
  %1694 = vst.msk [vmem:[%s6 + $0x28] sm:$0xf] %vm393, %v1662
  %1695 = vst.msk [vmem:[%s6 + $0x2c] sm:$0xf] %vm393, %v1663
  %1696 = vst.msk [vmem:[%s6 + $0x30] sm:$0xf] %vm393, %v1664
  %1697 = vst.msk [vmem:[%s6 + $0x34] sm:$0xf] %vm393, %v1665
  %1698 = vst.msk [vmem:[%s6 + $0x38] sm:$0xf] %vm393, %v1666
  %1699 = vst.msk [vmem:[%s6 + $0x3c] sm:$0xf] %vm393, %v1667
  %s1700 = scalar_lea.vmem %s4, 64
  %v1701 = vld [vmem:[%s1700] sm:$0xf]
  %v1702 = vld [vmem:[%s1700 + $0x4] sm:$0xf]
  %v1703 = vld [vmem:[%s1700 + $0x8] sm:$0xf]
  %v1704 = vld [vmem:[%s1700 + $0xc] sm:$0xf]
  %v1705 = vld [vmem:[%s1700 + $0x10] sm:$0xf]
  %v1706 = vld [vmem:[%s1700 + $0x14] sm:$0xf]
  %v1707 = vld [vmem:[%s1700 + $0x18] sm:$0xf]
  %v1708 = vld [vmem:[%s1700 + $0x1c] sm:$0xf]
  %v1709 = vld [vmem:[%s1700 + $0x20] sm:$0xf]
  %v1710 = vld [vmem:[%s1700 + $0x24] sm:$0xf]
  %v1711 = vld [vmem:[%s1700 + $0x28] sm:$0xf]
  %v1712 = vld [vmem:[%s1700 + $0x2c] sm:$0xf]
  %v1713 = vld [vmem:[%s1700 + $0x30] sm:$0xf]
  %v1714 = vld [vmem:[%s1700 + $0x34] sm:$0xf]
  %v1715 = vld [vmem:[%s1700 + $0x38] sm:$0xf]
  %v1716 = vld [vmem:[%s1700 + $0x3c] sm:$0xf]
  %v1733 = vunpack.c.l.b16 %v1701
  %v1734 = vunpack.c.l.b16 %v1702
  %v1735 = vunpack.c.l.b16 %v1703
  %v1736 = vunpack.c.l.b16 %v1704
  %v1737 = vunpack.c.l.b16 %v1705
  %v1738 = vunpack.c.l.b16 %v1706
  %v1739 = vunpack.c.l.b16 %v1707
  %v1740 = vunpack.c.l.b16 %v1708
  %v1741 = vunpack.c.l.b16 %v1709
  %v1742 = vunpack.c.l.b16 %v1710
  %v1743 = vunpack.c.l.b16 %v1711
  %v1744 = vunpack.c.l.b16 %v1712
  %v1745 = vunpack.c.l.b16 %v1713
  %v1746 = vunpack.c.l.b16 %v1714
  %v1747 = vunpack.c.l.b16 %v1715
  %v1748 = vunpack.c.l.b16 %v1716
  %v1749 = vpack.c.b16 %v1734, %v1733
  %v1750 = vpack.c.b16 %v1736, %v1735
  %v1751 = vpack.c.b16 %v1738, %v1737
  %v1752 = vpack.c.b16 %v1740, %v1739
  %v1753 = vpack.c.b16 %v1742, %v1741
  %v1754 = vpack.c.b16 %v1744, %v1743
  %v1755 = vpack.c.b16 %v1746, %v1745
  %v1756 = vpack.c.b16 %v1748, %v1747
  %v1758 = vsel %vm143, %v1749, 0
  %v1761 = vsel %vm143, %v1750, 0
  %v1764 = vsel %vm143, %v1751, 0
  %v1767 = vsel %vm143, %v1752, 0
  %v1770 = vsel %vm143, %v1753, 0
  %v1773 = vsel %vm143, %v1754, 0
  %v1776 = vsel %vm143, %v1755, 0
  %v1779 = vsel %vm143, %v1756, 0
  %1781 = vmatprep.subr.bf16.mxu0 0
  %1782 = vmatpush1.bf16.msra.mxu0 0
  %1783 = vmatprep.subr.bf16.mxu0 0
  %1784 = vmatpush1.bf16.msra.mxu0 0
  %1785 = vmatprep.subr.bf16.mxu0 0
  %1786 = vmatpush1.bf16.msra.mxu0 0
  %1787 = vmatprep.subr.bf16.mxu0 0
  %1788 = vmatpush1.bf16.msra.mxu0 0
  %1789 = vmatprep.subr.bf16.mxu0 0
  %1790 = vmatpush1.bf16.msra.mxu0 %v138
  %1791 = vmatprep.subr.bf16.mxu0 0
  %1792 = vmatpush1.bf16.msra.mxu0 %v137
  %1793 = vmatprep.subr.bf16.mxu0 0
  %1794 = vmatpush1.bf16.msra.mxu0 %v136
  %1795 = vmatprep.subr.bf16.mxu0 0
  %1796 = vmatpush1.bf16.msra.mxu0 %v135
  %1797 = vmatprep.subr.bf16.mxu0 0
  %1798 = vmatpush2.bf16.msra.mxu0 0
  %1799 = vmatprep.subr.bf16.mxu0 0
  %1800 = vmatpush2.bf16.msra.mxu0 0
  %1801 = vmatprep.subr.bf16.mxu0 0
  %1802 = vmatpush2.bf16.msra.mxu0 0
  %1803 = vmatprep.subr.bf16.mxu0 0
  %1804 = vmatpush2.bf16.msra.mxu0 0
  %1805 = vmatprep.subr.bf16.mxu0 0
  %1806 = vmatpush2.bf16.msra.mxu0 0
  %1807 = vmatprep.subr.bf16.mxu0 0
  %1808 = vmatpush2.bf16.msra.mxu0 0
  %1809 = vmatprep.subr.bf16.mxu0 0
  %1810 = vmatpush2.bf16.msra.mxu0 0
  %1811 = vmatprep.subr.bf16.mxu0 0
  %1812 = vmatpush2.bf16.msra.mxu0 0
  %1813 = vmatprep.mubr.bf16.mxu0 0
  %1814 = vmatmul.mubr.bf16.gmra.mxu0 %v1758
  %v1815 = vpop.f32.mrf.mxu0
  %v1816 = vadd.f32 0.0, %v1815
  %v1817 = vpop.f32.mrf.mxu0
  %v1818 = vpop.f32.mrf.mxu0
  %v1819 = vadd.f32 0.0, %v1818
  %v1820 = vpop.f32.mrf.mxu0
  %1821 = vmatprep.mubr.bf16.mxu0 0
  %1822 = vmatmul.mubr.bf16.gmra.mxu0 %v1761
  %v1823 = vpop.f32.mrf.mxu0
  %v1824 = vadd.f32 0.0, %v1823
  %v1825 = vpop.f32.mrf.mxu0
  %v1826 = vpop.f32.mrf.mxu0
  %v1827 = vadd.f32 0.0, %v1826
  %v1828 = vpop.f32.mrf.mxu0
  %1829 = vmatprep.mubr.bf16.mxu0 0
  %1830 = vmatmul.mubr.bf16.gmra.mxu0 %v1764
  %v1831 = vpop.f32.mrf.mxu0
  %v1832 = vadd.f32 0.0, %v1831
  %v1833 = vpop.f32.mrf.mxu0
  %v1834 = vpop.f32.mrf.mxu0
  %v1835 = vadd.f32 0.0, %v1834
  %v1836 = vpop.f32.mrf.mxu0
  %1837 = vmatprep.mubr.bf16.mxu0 0
  %1838 = vmatmul.mubr.bf16.gmra.mxu0 %v1767
  %v1839 = vpop.f32.mrf.mxu0
  %v1840 = vadd.f32 0.0, %v1839
  %v1841 = vpop.f32.mrf.mxu0
  %v1842 = vpop.f32.mrf.mxu0
  %v1843 = vadd.f32 0.0, %v1842
  %v1844 = vpop.f32.mrf.mxu0
  %1845 = vmatprep.mubr.bf16.mxu0 0
  %1846 = vmatmul.mubr.bf16.gmra.mxu0 %v1770
  %v1847 = vpop.f32.mrf.mxu0
  %v1848 = vadd.f32 0.0, %v1847
  %v1849 = vpop.f32.mrf.mxu0
  %v1850 = vpop.f32.mrf.mxu0
  %v1851 = vadd.f32 0.0, %v1850
  %v1852 = vpop.f32.mrf.mxu0
  %1853 = vmatprep.mubr.bf16.mxu0 0
  %1854 = vmatmul.mubr.bf16.gmra.mxu0 %v1773
  %v1855 = vpop.f32.mrf.mxu0
  %v1856 = vadd.f32 0.0, %v1855
  %v1857 = vpop.f32.mrf.mxu0
  %v1858 = vpop.f32.mrf.mxu0
  %v1859 = vadd.f32 0.0, %v1858
  %v1860 = vpop.f32.mrf.mxu0
  %1861 = vmatprep.mubr.bf16.mxu0 0
  %1862 = vmatmul.mubr.bf16.gmra.mxu0 %v1776
  %v1863 = vpop.f32.mrf.mxu0
  %v1864 = vadd.f32 0.0, %v1863
  %v1865 = vpop.f32.mrf.mxu0
  %v1866 = vpop.f32.mrf.mxu0
  %v1867 = vadd.f32 0.0, %v1866
  %v1868 = vpop.f32.mrf.mxu0
  %1869 = vmatprep.mubr.bf16.mxu0 0
  %1870 = vmatmul.mubr.bf16.gmra.mxu0 %v1779
  %v1871 = vpop.f32.mrf.mxu0
  %v1872 = vadd.f32 0.0, %v1871
  %v1873 = vpop.f32.mrf.mxu0
  %v1874 = vpop.f32.mrf.mxu0
  %v1875 = vadd.f32 0.0, %v1874
  %v1876 = vpop.f32.mrf.mxu0
  %1877 = vdwg.mxu0
  %v1878 = vunpack.c.l.bf16 %v1701
  %v1879 = vunpack.c.l.bf16 %v1702
  %v1880 = vunpack.c.l.bf16 %v1703
  %v1881 = vunpack.c.l.bf16 %v1704
  %v1882 = vunpack.c.l.bf16 %v1705
  %v1883 = vunpack.c.l.bf16 %v1706
  %v1884 = vunpack.c.l.bf16 %v1707
  %v1885 = vunpack.c.l.bf16 %v1708
  %v1886 = vunpack.c.l.bf16 %v1709
  %v1887 = vunpack.c.l.bf16 %v1710
  %v1888 = vunpack.c.l.bf16 %v1711
  %v1889 = vunpack.c.l.bf16 %v1712
  %v1890 = vunpack.c.l.bf16 %v1713
  %v1891 = vunpack.c.l.bf16 %v1714
  %v1892 = vunpack.c.l.bf16 %v1715
  %v1893 = vunpack.c.l.bf16 %v1716
  %v1894 = vmul.f32 %v1878, %v23
  %v1895 = vmul.f32 %v1879, %v24
  %v1896 = vmul.f32 %v1880, %v25
  %v1897 = vmul.f32 %v1881, %v26
  %v1898 = vmul.f32 %v1882, %v27
  %v1899 = vmul.f32 %v1883, %v28
  %v1900 = vmul.f32 %v1884, %v29
  %v1901 = vmul.f32 %v1885, %v30
  %v1902 = vmul.f32 %v1886, %v31
  %v1903 = vmul.f32 %v1887, %v32
  %v1904 = vmul.f32 %v1888, %v33
  %v1905 = vmul.f32 %v1889, %v34
  %v1906 = vmul.f32 %v1890, %v35
  %v1907 = vmul.f32 %v1891, %v36
  %v1908 = vmul.f32 %v1892, %v37
  %v1909 = vmul.f32 %v1893, %v38
  %v1910 = vmul.f32 %v1816, %v39
  %v1911 = vmul.f32 %v1819, %v40
  %v1912 = vmul.f32 %v1824, %v41
  %v1913 = vmul.f32 %v1827, %v42
  %v1914 = vmul.f32 %v1832, %v43
  %v1915 = vmul.f32 %v1835, %v44
  %v1916 = vmul.f32 %v1840, %v45
  %v1917 = vmul.f32 %v1843, %v46
  %v1918 = vmul.f32 %v1848, %v47
  %v1919 = vmul.f32 %v1851, %v48
  %v1920 = vmul.f32 %v1856, %v49
  %v1921 = vmul.f32 %v1859, %v50
  %v1922 = vmul.f32 %v1864, %v51
  %v1923 = vmul.f32 %v1867, %v52
  %v1924 = vmul.f32 %v1872, %v53
  %v1925 = vmul.f32 %v1875, %v54
  %v1926 = vadd.f32 %v1894, %v1910
  %v1927 = vadd.f32 %v1895, %v1911
  %v1928 = vadd.f32 %v1896, %v1912
  %v1929 = vadd.f32 %v1897, %v1913
  %v1930 = vadd.f32 %v1898, %v1914
  %v1931 = vadd.f32 %v1899, %v1915
  %v1932 = vadd.f32 %v1900, %v1916
  %v1933 = vadd.f32 %v1901, %v1917
  %v1934 = vadd.f32 %v1902, %v1918
  %v1935 = vadd.f32 %v1903, %v1919
  %v1936 = vadd.f32 %v1904, %v1920
  %v1937 = vadd.f32 %v1905, %v1921
  %v1938 = vadd.f32 %v1906, %v1922
  %v1939 = vadd.f32 %v1907, %v1923
  %v1940 = vadd.f32 %v1908, %v1924
  %v1941 = vadd.f32 %v1909, %v1925
  %v1942 = vpack.c.bf16 %v1927, %v1926
  %v1943 = vpack.c.bf16 %v1929, %v1928
  %v1944 = vpack.c.bf16 %v1931, %v1930
  %v1945 = vpack.c.bf16 %v1933, %v1932
  %v1946 = vpack.c.bf16 %v1935, %v1934
  %v1947 = vpack.c.bf16 %v1937, %v1936
  %v1948 = vpack.c.bf16 %v1939, %v1938
  %v1949 = vpack.c.bf16 %v1941, %v1940
  %v1958 = vunpack.c.l.b16 %v1942
  %v1959 = vunpack.c.h.b16 %v1942
  %v1960 = vunpack.c.l.b16 %v1943
  %v1961 = vunpack.c.h.b16 %v1943
  %v1962 = vunpack.c.l.b16 %v1944
  %v1963 = vunpack.c.h.b16 %v1944
  %v1964 = vunpack.c.l.b16 %v1945
  %v1965 = vunpack.c.h.b16 %v1945
  %v1966 = vunpack.c.l.b16 %v1946
  %v1967 = vunpack.c.h.b16 %v1946
  %v1968 = vunpack.c.l.b16 %v1947
  %v1969 = vunpack.c.h.b16 %v1947
  %v1970 = vunpack.c.l.b16 %v1948
  %v1971 = vunpack.c.h.b16 %v1948
  %v1972 = vunpack.c.l.b16 %v1949
  %v1973 = vunpack.c.h.b16 %v1949
  %v1974 = vpack.c.b16 %v1958, %v1958
  %v1975 = vpack.c.b16 %v1959, %v1959
  %v1976 = vpack.c.b16 %v1960, %v1960
  %v1977 = vpack.c.b16 %v1961, %v1961
  %v1978 = vpack.c.b16 %v1962, %v1962
  %v1979 = vpack.c.b16 %v1963, %v1963
  %v1980 = vpack.c.b16 %v1964, %v1964
  %v1981 = vpack.c.b16 %v1965, %v1965
  %v1982 = vpack.c.b16 %v1966, %v1966
  %v1983 = vpack.c.b16 %v1967, %v1967
  %v1984 = vpack.c.b16 %v1968, %v1968
  %v1985 = vpack.c.b16 %v1969, %v1969
  %v1986 = vpack.c.b16 %v1970, %v1970
  %v1987 = vpack.c.b16 %v1971, %v1971
  %v1988 = vpack.c.b16 %v1972, %v1972
  %v1989 = vpack.c.b16 %v1973, %v1973
  %s2006 = scalar_lea.vmem %s6, 64
  %2007 = vst.msk [vmem:[%s2006] sm:$0xf] %vm393, %v1974
  %2008 = vst.msk [vmem:[%s2006 + $0x4] sm:$0xf] %vm393, %v1975
  %2009 = vst.msk [vmem:[%s2006 + $0x8] sm:$0xf] %vm393, %v1976
  %2010 = vst.msk [vmem:[%s2006 + $0xc] sm:$0xf] %vm393, %v1977
  %2011 = vst.msk [vmem:[%s2006 + $0x10] sm:$0xf] %vm393, %v1978
  %2012 = vst.msk [vmem:[%s2006 + $0x14] sm:$0xf] %vm393, %v1979
  %2013 = vst.msk [vmem:[%s2006 + $0x18] sm:$0xf] %vm393, %v1980
  %2014 = vst.msk [vmem:[%s2006 + $0x1c] sm:$0xf] %vm393, %v1981
  %2015 = vst.msk [vmem:[%s2006 + $0x20] sm:$0xf] %vm393, %v1982
  %2016 = vst.msk [vmem:[%s2006 + $0x24] sm:$0xf] %vm393, %v1983
  %2017 = vst.msk [vmem:[%s2006 + $0x28] sm:$0xf] %vm393, %v1984
  %2018 = vst.msk [vmem:[%s2006 + $0x2c] sm:$0xf] %vm393, %v1985
  %2019 = vst.msk [vmem:[%s2006 + $0x30] sm:$0xf] %vm393, %v1986
  %2020 = vst.msk [vmem:[%s2006 + $0x34] sm:$0xf] %vm393, %v1987
  %2021 = vst.msk [vmem:[%s2006 + $0x38] sm:$0xf] %vm393, %v1988
  %2022 = vst.msk [vmem:[%s2006 + $0x3c] sm:$0xf] %vm393, %v1989
  %s2023 = scalar_lea.vmem %s4, 128
  %v2024 = vld [vmem:[%s2023] sm:$0xf]
  %v2025 = vld [vmem:[%s2023 + $0x4] sm:$0xf]
  %v2026 = vld [vmem:[%s2023 + $0x8] sm:$0xf]
  %v2027 = vld [vmem:[%s2023 + $0xc] sm:$0xf]
  %v2028 = vld [vmem:[%s2023 + $0x10] sm:$0xf]
  %v2029 = vld [vmem:[%s2023 + $0x14] sm:$0xf]
  %v2030 = vld [vmem:[%s2023 + $0x18] sm:$0xf]
  %v2031 = vld [vmem:[%s2023 + $0x1c] sm:$0xf]
  %v2032 = vld [vmem:[%s2023 + $0x20] sm:$0xf]
  %v2033 = vld [vmem:[%s2023 + $0x24] sm:$0xf]
  %v2034 = vld [vmem:[%s2023 + $0x28] sm:$0xf]
  %v2035 = vld [vmem:[%s2023 + $0x2c] sm:$0xf]
  %v2036 = vld [vmem:[%s2023 + $0x30] sm:$0xf]
  %v2037 = vld [vmem:[%s2023 + $0x34] sm:$0xf]
  %v2038 = vld [vmem:[%s2023 + $0x38] sm:$0xf]
  %v2039 = vld [vmem:[%s2023 + $0x3c] sm:$0xf]
  %v2056 = vunpack.c.l.b16 %v2024
  %v2057 = vunpack.c.l.b16 %v2025
  %v2058 = vunpack.c.l.b16 %v2026
  %v2059 = vunpack.c.l.b16 %v2027
  %v2060 = vunpack.c.l.b16 %v2028
  %v2061 = vunpack.c.l.b16 %v2029
  %v2062 = vunpack.c.l.b16 %v2030
  %v2063 = vunpack.c.l.b16 %v2031
  %v2064 = vunpack.c.l.b16 %v2032
  %v2065 = vunpack.c.l.b16 %v2033
  %v2066 = vunpack.c.l.b16 %v2034
  %v2067 = vunpack.c.l.b16 %v2035
  %v2068 = vunpack.c.l.b16 %v2036
  %v2069 = vunpack.c.l.b16 %v2037
  %v2070 = vunpack.c.l.b16 %v2038
  %v2071 = vunpack.c.l.b16 %v2039
  %v2072 = vpack.c.b16 %v2057, %v2056
  %v2073 = vpack.c.b16 %v2059, %v2058
  %v2074 = vpack.c.b16 %v2061, %v2060
  %v2075 = vpack.c.b16 %v2063, %v2062
  %v2076 = vpack.c.b16 %v2065, %v2064
  %v2077 = vpack.c.b16 %v2067, %v2066
  %v2078 = vpack.c.b16 %v2069, %v2068
  %v2079 = vpack.c.b16 %v2071, %v2070
  %v2081 = vsel %vm143, %v2072, 0
  %v2084 = vsel %vm143, %v2073, 0
  %v2087 = vsel %vm143, %v2074, 0
  %v2090 = vsel %vm143, %v2075, 0
  %v2093 = vsel %vm143, %v2076, 0
  %v2096 = vsel %vm143, %v2077, 0
  %v2099 = vsel %vm143, %v2078, 0
  %v2102 = vsel %vm143, %v2079, 0
  %2104 = vmatprep.subr.bf16.mxu0 0
  %2105 = vmatpush1.bf16.msra.mxu0 0
  %2106 = vmatprep.subr.bf16.mxu0 0
  %2107 = vmatpush1.bf16.msra.mxu0 0
  %2108 = vmatprep.subr.bf16.mxu0 0
  %2109 = vmatpush1.bf16.msra.mxu0 0
  %2110 = vmatprep.subr.bf16.mxu0 0
  %2111 = vmatpush1.bf16.msra.mxu0 0
  %2112 = vmatprep.subr.bf16.mxu0 0
  %2113 = vmatpush1.bf16.msra.mxu0 %v138
  %2114 = vmatprep.subr.bf16.mxu0 0
  %2115 = vmatpush1.bf16.msra.mxu0 %v137
  %2116 = vmatprep.subr.bf16.mxu0 0
  %2117 = vmatpush1.bf16.msra.mxu0 %v136
  %2118 = vmatprep.subr.bf16.mxu0 0
  %2119 = vmatpush1.bf16.msra.mxu0 %v135
  %2120 = vmatprep.subr.bf16.mxu0 0
  %2121 = vmatpush2.bf16.msra.mxu0 0
  %2122 = vmatprep.subr.bf16.mxu0 0
  %2123 = vmatpush2.bf16.msra.mxu0 0
  %2124 = vmatprep.subr.bf16.mxu0 0
  %2125 = vmatpush2.bf16.msra.mxu0 0
  %2126 = vmatprep.subr.bf16.mxu0 0
  %2127 = vmatpush2.bf16.msra.mxu0 0
  %2128 = vmatprep.subr.bf16.mxu0 0
  %2129 = vmatpush2.bf16.msra.mxu0 0
  %2130 = vmatprep.subr.bf16.mxu0 0
  %2131 = vmatpush2.bf16.msra.mxu0 0
  %2132 = vmatprep.subr.bf16.mxu0 0
  %2133 = vmatpush2.bf16.msra.mxu0 0
  %2134 = vmatprep.subr.bf16.mxu0 0
  %2135 = vmatpush2.bf16.msra.mxu0 0
  %2136 = vmatprep.mubr.bf16.mxu0 0
  %2137 = vmatmul.mubr.bf16.gmra.mxu0 %v2081
  %v2138 = vpop.f32.mrf.mxu0
  %v2139 = vadd.f32 0.0, %v2138
  %v2140 = vpop.f32.mrf.mxu0
  %v2141 = vpop.f32.mrf.mxu0
  %v2142 = vadd.f32 0.0, %v2141
  %v2143 = vpop.f32.mrf.mxu0
  %2144 = vmatprep.mubr.bf16.mxu0 0
  %2145 = vmatmul.mubr.bf16.gmra.mxu0 %v2084
  %v2146 = vpop.f32.mrf.mxu0
  %v2147 = vadd.f32 0.0, %v2146
  %v2148 = vpop.f32.mrf.mxu0
  %v2149 = vpop.f32.mrf.mxu0
  %v2150 = vadd.f32 0.0, %v2149
  %v2151 = vpop.f32.mrf.mxu0
  %2152 = vmatprep.mubr.bf16.mxu0 0
  %2153 = vmatmul.mubr.bf16.gmra.mxu0 %v2087
  %v2154 = vpop.f32.mrf.mxu0
  %v2155 = vadd.f32 0.0, %v2154
  %v2156 = vpop.f32.mrf.mxu0
  %v2157 = vpop.f32.mrf.mxu0
  %v2158 = vadd.f32 0.0, %v2157
  %v2159 = vpop.f32.mrf.mxu0
  %2160 = vmatprep.mubr.bf16.mxu0 0
  %2161 = vmatmul.mubr.bf16.gmra.mxu0 %v2090
  %v2162 = vpop.f32.mrf.mxu0
  %v2163 = vadd.f32 0.0, %v2162
  %v2164 = vpop.f32.mrf.mxu0
  %v2165 = vpop.f32.mrf.mxu0
  %v2166 = vadd.f32 0.0, %v2165
  %v2167 = vpop.f32.mrf.mxu0
  %2168 = vmatprep.mubr.bf16.mxu0 0
  %2169 = vmatmul.mubr.bf16.gmra.mxu0 %v2093
  %v2170 = vpop.f32.mrf.mxu0
  %v2171 = vadd.f32 0.0, %v2170
  %v2172 = vpop.f32.mrf.mxu0
  %v2173 = vpop.f32.mrf.mxu0
  %v2174 = vadd.f32 0.0, %v2173
  %v2175 = vpop.f32.mrf.mxu0
  %2176 = vmatprep.mubr.bf16.mxu0 0
  %2177 = vmatmul.mubr.bf16.gmra.mxu0 %v2096
  %v2178 = vpop.f32.mrf.mxu0
  %v2179 = vadd.f32 0.0, %v2178
  %v2180 = vpop.f32.mrf.mxu0
  %v2181 = vpop.f32.mrf.mxu0
  %v2182 = vadd.f32 0.0, %v2181
  %v2183 = vpop.f32.mrf.mxu0
  %2184 = vmatprep.mubr.bf16.mxu0 0
  %2185 = vmatmul.mubr.bf16.gmra.mxu0 %v2099
  %v2186 = vpop.f32.mrf.mxu0
  %v2187 = vadd.f32 0.0, %v2186
  %v2188 = vpop.f32.mrf.mxu0
  %v2189 = vpop.f32.mrf.mxu0
  %v2190 = vadd.f32 0.0, %v2189
  %v2191 = vpop.f32.mrf.mxu0
  %2192 = vmatprep.mubr.bf16.mxu0 0
  %2193 = vmatmul.mubr.bf16.gmra.mxu0 %v2102
  %v2194 = vpop.f32.mrf.mxu0
  %v2195 = vadd.f32 0.0, %v2194
  %v2196 = vpop.f32.mrf.mxu0
  %v2197 = vpop.f32.mrf.mxu0
  %v2198 = vadd.f32 0.0, %v2197
  %v2199 = vpop.f32.mrf.mxu0
  %2200 = vdwg.mxu0
  %v2201 = vunpack.c.l.bf16 %v2024
  %v2202 = vunpack.c.l.bf16 %v2025
  %v2203 = vunpack.c.l.bf16 %v2026
  %v2204 = vunpack.c.l.bf16 %v2027
  %v2205 = vunpack.c.l.bf16 %v2028
  %v2206 = vunpack.c.l.bf16 %v2029
  %v2207 = vunpack.c.l.bf16 %v2030
  %v2208 = vunpack.c.l.bf16 %v2031
  %v2209 = vunpack.c.l.bf16 %v2032
  %v2210 = vunpack.c.l.bf16 %v2033
  %v2211 = vunpack.c.l.bf16 %v2034
  %v2212 = vunpack.c.l.bf16 %v2035
  %v2213 = vunpack.c.l.bf16 %v2036
  %v2214 = vunpack.c.l.bf16 %v2037
  %v2215 = vunpack.c.l.bf16 %v2038
  %v2216 = vunpack.c.l.bf16 %v2039
  %v2217 = vmul.f32 %v2201, %v23
  %v2218 = vmul.f32 %v2202, %v24
  %v2219 = vmul.f32 %v2203, %v25
  %v2220 = vmul.f32 %v2204, %v26
  %v2221 = vmul.f32 %v2205, %v27
  %v2222 = vmul.f32 %v2206, %v28
  %v2223 = vmul.f32 %v2207, %v29
  %v2224 = vmul.f32 %v2208, %v30
  %v2225 = vmul.f32 %v2209, %v31
  %v2226 = vmul.f32 %v2210, %v32
  %v2227 = vmul.f32 %v2211, %v33
  %v2228 = vmul.f32 %v2212, %v34
  %v2229 = vmul.f32 %v2213, %v35
  %v2230 = vmul.f32 %v2214, %v36
  %v2231 = vmul.f32 %v2215, %v37
  %v2232 = vmul.f32 %v2216, %v38
  %v2233 = vmul.f32 %v2139, %v39
  %v2234 = vmul.f32 %v2142, %v40
  %v2235 = vmul.f32 %v2147, %v41
  %v2236 = vmul.f32 %v2150, %v42
  %v2237 = vmul.f32 %v2155, %v43
  %v2238 = vmul.f32 %v2158, %v44
  %v2239 = vmul.f32 %v2163, %v45
  %v2240 = vmul.f32 %v2166, %v46
  %v2241 = vmul.f32 %v2171, %v47
  %v2242 = vmul.f32 %v2174, %v48
  %v2243 = vmul.f32 %v2179, %v49
  %v2244 = vmul.f32 %v2182, %v50
  %v2245 = vmul.f32 %v2187, %v51
  %v2246 = vmul.f32 %v2190, %v52
  %v2247 = vmul.f32 %v2195, %v53
  %v2248 = vmul.f32 %v2198, %v54
  %v2249 = vadd.f32 %v2217, %v2233
  %v2250 = vadd.f32 %v2218, %v2234
  %v2251 = vadd.f32 %v2219, %v2235
  %v2252 = vadd.f32 %v2220, %v2236
  %v2253 = vadd.f32 %v2221, %v2237
  %v2254 = vadd.f32 %v2222, %v2238
  %v2255 = vadd.f32 %v2223, %v2239
  %v2256 = vadd.f32 %v2224, %v2240
  %v2257 = vadd.f32 %v2225, %v2241
  %v2258 = vadd.f32 %v2226, %v2242
  %v2259 = vadd.f32 %v2227, %v2243
  %v2260 = vadd.f32 %v2228, %v2244
  %v2261 = vadd.f32 %v2229, %v2245
  %v2262 = vadd.f32 %v2230, %v2246
  %v2263 = vadd.f32 %v2231, %v2247
  %v2264 = vadd.f32 %v2232, %v2248
  %v2265 = vpack.c.bf16 %v2250, %v2249
  %v2266 = vpack.c.bf16 %v2252, %v2251
  %v2267 = vpack.c.bf16 %v2254, %v2253
  %v2268 = vpack.c.bf16 %v2256, %v2255
  %v2269 = vpack.c.bf16 %v2258, %v2257
  %v2270 = vpack.c.bf16 %v2260, %v2259
  %v2271 = vpack.c.bf16 %v2262, %v2261
  %v2272 = vpack.c.bf16 %v2264, %v2263
  %v2281 = vunpack.c.l.b16 %v2265
  %v2282 = vunpack.c.h.b16 %v2265
  %v2283 = vunpack.c.l.b16 %v2266
  %v2284 = vunpack.c.h.b16 %v2266
  %v2285 = vunpack.c.l.b16 %v2267
  %v2286 = vunpack.c.h.b16 %v2267
  %v2287 = vunpack.c.l.b16 %v2268
  %v2288 = vunpack.c.h.b16 %v2268
  %v2289 = vunpack.c.l.b16 %v2269
  %v2290 = vunpack.c.h.b16 %v2269
  %v2291 = vunpack.c.l.b16 %v2270
  %v2292 = vunpack.c.h.b16 %v2270
  %v2293 = vunpack.c.l.b16 %v2271
  %v2294 = vunpack.c.h.b16 %v2271
  %v2295 = vunpack.c.l.b16 %v2272
  %v2296 = vunpack.c.h.b16 %v2272
  %v2297 = vpack.c.b16 %v2281, %v2281
  %v2298 = vpack.c.b16 %v2282, %v2282
  %v2299 = vpack.c.b16 %v2283, %v2283
  %v2300 = vpack.c.b16 %v2284, %v2284
  %v2301 = vpack.c.b16 %v2285, %v2285
  %v2302 = vpack.c.b16 %v2286, %v2286
  %v2303 = vpack.c.b16 %v2287, %v2287
  %v2304 = vpack.c.b16 %v2288, %v2288
  %v2305 = vpack.c.b16 %v2289, %v2289
  %v2306 = vpack.c.b16 %v2290, %v2290
  %v2307 = vpack.c.b16 %v2291, %v2291
  %v2308 = vpack.c.b16 %v2292, %v2292
  %v2309 = vpack.c.b16 %v2293, %v2293
  %v2310 = vpack.c.b16 %v2294, %v2294
  %v2311 = vpack.c.b16 %v2295, %v2295
  %v2312 = vpack.c.b16 %v2296, %v2296
  %s2329 = scalar_lea.vmem %s6, 128
  %2330 = vst.msk [vmem:[%s2329] sm:$0xf] %vm393, %v2297
  %2331 = vst.msk [vmem:[%s2329 + $0x4] sm:$0xf] %vm393, %v2298
  %2332 = vst.msk [vmem:[%s2329 + $0x8] sm:$0xf] %vm393, %v2299
  %2333 = vst.msk [vmem:[%s2329 + $0xc] sm:$0xf] %vm393, %v2300
  %2334 = vst.msk [vmem:[%s2329 + $0x10] sm:$0xf] %vm393, %v2301
  %2335 = vst.msk [vmem:[%s2329 + $0x14] sm:$0xf] %vm393, %v2302
  %2336 = vst.msk [vmem:[%s2329 + $0x18] sm:$0xf] %vm393, %v2303
  %2337 = vst.msk [vmem:[%s2329 + $0x1c] sm:$0xf] %vm393, %v2304
  %2338 = vst.msk [vmem:[%s2329 + $0x20] sm:$0xf] %vm393, %v2305
  %2339 = vst.msk [vmem:[%s2329 + $0x24] sm:$0xf] %vm393, %v2306
  %2340 = vst.msk [vmem:[%s2329 + $0x28] sm:$0xf] %vm393, %v2307
  %2341 = vst.msk [vmem:[%s2329 + $0x2c] sm:$0xf] %vm393, %v2308
  %2342 = vst.msk [vmem:[%s2329 + $0x30] sm:$0xf] %vm393, %v2309
  %2343 = vst.msk [vmem:[%s2329 + $0x34] sm:$0xf] %vm393, %v2310
  %2344 = vst.msk [vmem:[%s2329 + $0x38] sm:$0xf] %vm393, %v2311
  %2345 = vst.msk [vmem:[%s2329 + $0x3c] sm:$0xf] %vm393, %v2312
  %s2346 = scalar_lea.vmem %s4, 192
  %v2347 = vld [vmem:[%s2346] sm:$0xf]
  %v2348 = vld [vmem:[%s2346 + $0x4] sm:$0xf]
  %v2349 = vld [vmem:[%s2346 + $0x8] sm:$0xf]
  %v2350 = vld [vmem:[%s2346 + $0xc] sm:$0xf]
  %v2351 = vld [vmem:[%s2346 + $0x10] sm:$0xf]
  %v2352 = vld [vmem:[%s2346 + $0x14] sm:$0xf]
  %v2353 = vld [vmem:[%s2346 + $0x18] sm:$0xf]
  %v2354 = vld [vmem:[%s2346 + $0x1c] sm:$0xf]
  %v2355 = vld [vmem:[%s2346 + $0x20] sm:$0xf]
  %v2356 = vld [vmem:[%s2346 + $0x24] sm:$0xf]
  %v2357 = vld [vmem:[%s2346 + $0x28] sm:$0xf]
  %v2358 = vld [vmem:[%s2346 + $0x2c] sm:$0xf]
  %v2359 = vld [vmem:[%s2346 + $0x30] sm:$0xf]
  %v2360 = vld [vmem:[%s2346 + $0x34] sm:$0xf]
  %v2361 = vld [vmem:[%s2346 + $0x38] sm:$0xf]
  %v2362 = vld [vmem:[%s2346 + $0x3c] sm:$0xf]
  %v2379 = vunpack.c.l.b16 %v2347
  %v2380 = vunpack.c.l.b16 %v2348
  %v2381 = vunpack.c.l.b16 %v2349
  %v2382 = vunpack.c.l.b16 %v2350
  %v2383 = vunpack.c.l.b16 %v2351
  %v2384 = vunpack.c.l.b16 %v2352
  %v2385 = vunpack.c.l.b16 %v2353
  %v2386 = vunpack.c.l.b16 %v2354
  %v2387 = vunpack.c.l.b16 %v2355
  %v2388 = vunpack.c.l.b16 %v2356
  %v2389 = vunpack.c.l.b16 %v2357
  %v2390 = vunpack.c.l.b16 %v2358
  %v2391 = vunpack.c.l.b16 %v2359
  %v2392 = vunpack.c.l.b16 %v2360
  %v2393 = vunpack.c.l.b16 %v2361
  %v2394 = vunpack.c.l.b16 %v2362
  %v2395 = vpack.c.b16 %v2380, %v2379
  %v2396 = vpack.c.b16 %v2382, %v2381
  %v2397 = vpack.c.b16 %v2384, %v2383
  %v2398 = vpack.c.b16 %v2386, %v2385
  %v2399 = vpack.c.b16 %v2388, %v2387
  %v2400 = vpack.c.b16 %v2390, %v2389
  %v2401 = vpack.c.b16 %v2392, %v2391
  %v2402 = vpack.c.b16 %v2394, %v2393
  %v2404 = vsel %vm143, %v2395, 0
  %v2407 = vsel %vm143, %v2396, 0
  %v2410 = vsel %vm143, %v2397, 0
  %v2413 = vsel %vm143, %v2398, 0
  %v2416 = vsel %vm143, %v2399, 0
  %v2419 = vsel %vm143, %v2400, 0
  %v2422 = vsel %vm143, %v2401, 0
  %v2425 = vsel %vm143, %v2402, 0
  %2427 = vmatprep.subr.bf16.mxu0 0
  %2428 = vmatpush1.bf16.msra.mxu0 0
  %2429 = vmatprep.subr.bf16.mxu0 0
  %2430 = vmatpush1.bf16.msra.mxu0 0
  %2431 = vmatprep.subr.bf16.mxu0 0
  %2432 = vmatpush1.bf16.msra.mxu0 0
  %2433 = vmatprep.subr.bf16.mxu0 0
  %2434 = vmatpush1.bf16.msra.mxu0 0
  %2435 = vmatprep.subr.bf16.mxu0 0
  %2436 = vmatpush1.bf16.msra.mxu0 %v138
  %2437 = vmatprep.subr.bf16.mxu0 0
  %2438 = vmatpush1.bf16.msra.mxu0 %v137
  %2439 = vmatprep.subr.bf16.mxu0 0
  %2440 = vmatpush1.bf16.msra.mxu0 %v136
  %2441 = vmatprep.subr.bf16.mxu0 0
  %2442 = vmatpush1.bf16.msra.mxu0 %v135
  %2443 = vmatprep.subr.bf16.mxu0 0
  %2444 = vmatpush2.bf16.msra.mxu0 0
  %2445 = vmatprep.subr.bf16.mxu0 0
  %2446 = vmatpush2.bf16.msra.mxu0 0
  %2447 = vmatprep.subr.bf16.mxu0 0
  %2448 = vmatpush2.bf16.msra.mxu0 0
  %2449 = vmatprep.subr.bf16.mxu0 0
  %2450 = vmatpush2.bf16.msra.mxu0 0
  %2451 = vmatprep.subr.bf16.mxu0 0
  %2452 = vmatpush2.bf16.msra.mxu0 0
  %2453 = vmatprep.subr.bf16.mxu0 0
  %2454 = vmatpush2.bf16.msra.mxu0 0
  %2455 = vmatprep.subr.bf16.mxu0 0
  %2456 = vmatpush2.bf16.msra.mxu0 0
  %2457 = vmatprep.subr.bf16.mxu0 0
  %2458 = vmatpush2.bf16.msra.mxu0 0
  %2459 = vmatprep.mubr.bf16.mxu0 0
  %2460 = vmatmul.mubr.bf16.gmra.mxu0 %v2404
  %v2461 = vpop.f32.mrf.mxu0
  %v2462 = vadd.f32 0.0, %v2461
  %v2463 = vpop.f32.mrf.mxu0
  %v2464 = vpop.f32.mrf.mxu0
  %v2465 = vadd.f32 0.0, %v2464
  %v2466 = vpop.f32.mrf.mxu0
  %2467 = vmatprep.mubr.bf16.mxu0 0
  %2468 = vmatmul.mubr.bf16.gmra.mxu0 %v2407
  %v2469 = vpop.f32.mrf.mxu0
  %v2470 = vadd.f32 0.0, %v2469
  %v2471 = vpop.f32.mrf.mxu0
  %v2472 = vpop.f32.mrf.mxu0
  %v2473 = vadd.f32 0.0, %v2472
  %v2474 = vpop.f32.mrf.mxu0
  %2475 = vmatprep.mubr.bf16.mxu0 0
  %2476 = vmatmul.mubr.bf16.gmra.mxu0 %v2410
  %v2477 = vpop.f32.mrf.mxu0
  %v2478 = vadd.f32 0.0, %v2477
  %v2479 = vpop.f32.mrf.mxu0
  %v2480 = vpop.f32.mrf.mxu0
  %v2481 = vadd.f32 0.0, %v2480
  %v2482 = vpop.f32.mrf.mxu0
  %2483 = vmatprep.mubr.bf16.mxu0 0
  %2484 = vmatmul.mubr.bf16.gmra.mxu0 %v2413
  %v2485 = vpop.f32.mrf.mxu0
  %v2486 = vadd.f32 0.0, %v2485
  %v2487 = vpop.f32.mrf.mxu0
  %v2488 = vpop.f32.mrf.mxu0
  %v2489 = vadd.f32 0.0, %v2488
  %v2490 = vpop.f32.mrf.mxu0
  %2491 = vmatprep.mubr.bf16.mxu0 0
  %2492 = vmatmul.mubr.bf16.gmra.mxu0 %v2416
  %v2493 = vpop.f32.mrf.mxu0
  %v2494 = vadd.f32 0.0, %v2493
  %v2495 = vpop.f32.mrf.mxu0
  %v2496 = vpop.f32.mrf.mxu0
  %v2497 = vadd.f32 0.0, %v2496
  %v2498 = vpop.f32.mrf.mxu0
  %2499 = vmatprep.mubr.bf16.mxu0 0
  %2500 = vmatmul.mubr.bf16.gmra.mxu0 %v2419
  %v2501 = vpop.f32.mrf.mxu0
  %v2502 = vadd.f32 0.0, %v2501
  %v2503 = vpop.f32.mrf.mxu0
  %v2504 = vpop.f32.mrf.mxu0
  %v2505 = vadd.f32 0.0, %v2504
  %v2506 = vpop.f32.mrf.mxu0
  %2507 = vmatprep.mubr.bf16.mxu0 0
  %2508 = vmatmul.mubr.bf16.gmra.mxu0 %v2422
  %v2509 = vpop.f32.mrf.mxu0
  %v2510 = vadd.f32 0.0, %v2509
  %v2511 = vpop.f32.mrf.mxu0
  %v2512 = vpop.f32.mrf.mxu0
  %v2513 = vadd.f32 0.0, %v2512
  %v2514 = vpop.f32.mrf.mxu0
  %2515 = vmatprep.mubr.bf16.mxu0 0
  %2516 = vmatmul.mubr.bf16.gmra.mxu0 %v2425
  %v2517 = vpop.f32.mrf.mxu0
  %v2518 = vadd.f32 0.0, %v2517
  %v2519 = vpop.f32.mrf.mxu0
  %v2520 = vpop.f32.mrf.mxu0
  %v2521 = vadd.f32 0.0, %v2520
  %v2522 = vpop.f32.mrf.mxu0
  %2523 = vdwg.mxu0
  %v2524 = vunpack.c.l.bf16 %v2347
  %v2525 = vunpack.c.l.bf16 %v2348
  %v2526 = vunpack.c.l.bf16 %v2349
  %v2527 = vunpack.c.l.bf16 %v2350
  %v2528 = vunpack.c.l.bf16 %v2351
  %v2529 = vunpack.c.l.bf16 %v2352
  %v2530 = vunpack.c.l.bf16 %v2353
  %v2531 = vunpack.c.l.bf16 %v2354
  %v2532 = vunpack.c.l.bf16 %v2355
  %v2533 = vunpack.c.l.bf16 %v2356
  %v2534 = vunpack.c.l.bf16 %v2357
  %v2535 = vunpack.c.l.bf16 %v2358
  %v2536 = vunpack.c.l.bf16 %v2359
  %v2537 = vunpack.c.l.bf16 %v2360
  %v2538 = vunpack.c.l.bf16 %v2361
  %v2539 = vunpack.c.l.bf16 %v2362
  %v2540 = vmul.f32 %v2524, %v23
  %v2541 = vmul.f32 %v2525, %v24
  %v2542 = vmul.f32 %v2526, %v25
  %v2543 = vmul.f32 %v2527, %v26
  %v2544 = vmul.f32 %v2528, %v27
  %v2545 = vmul.f32 %v2529, %v28
  %v2546 = vmul.f32 %v2530, %v29
  %v2547 = vmul.f32 %v2531, %v30
  %v2548 = vmul.f32 %v2532, %v31
  %v2549 = vmul.f32 %v2533, %v32
  %v2550 = vmul.f32 %v2534, %v33
  %v2551 = vmul.f32 %v2535, %v34
  %v2552 = vmul.f32 %v2536, %v35
  %v2553 = vmul.f32 %v2537, %v36
  %v2554 = vmul.f32 %v2538, %v37
  %v2555 = vmul.f32 %v2539, %v38
  %v2556 = vmul.f32 %v2462, %v39
  %v2557 = vmul.f32 %v2465, %v40
  %v2558 = vmul.f32 %v2470, %v41
  %v2559 = vmul.f32 %v2473, %v42
  %v2560 = vmul.f32 %v2478, %v43
  %v2561 = vmul.f32 %v2481, %v44
  %v2562 = vmul.f32 %v2486, %v45
  %v2563 = vmul.f32 %v2489, %v46
  %v2564 = vmul.f32 %v2494, %v47
  %v2565 = vmul.f32 %v2497, %v48
  %v2566 = vmul.f32 %v2502, %v49
  %v2567 = vmul.f32 %v2505, %v50
  %v2568 = vmul.f32 %v2510, %v51
  %v2569 = vmul.f32 %v2513, %v52
  %v2570 = vmul.f32 %v2518, %v53
  %v2571 = vmul.f32 %v2521, %v54
  %v2572 = vadd.f32 %v2540, %v2556
  %v2573 = vadd.f32 %v2541, %v2557
  %v2574 = vadd.f32 %v2542, %v2558
  %v2575 = vadd.f32 %v2543, %v2559
  %v2576 = vadd.f32 %v2544, %v2560
  %v2577 = vadd.f32 %v2545, %v2561
  %v2578 = vadd.f32 %v2546, %v2562
  %v2579 = vadd.f32 %v2547, %v2563
  %v2580 = vadd.f32 %v2548, %v2564
  %v2581 = vadd.f32 %v2549, %v2565
  %v2582 = vadd.f32 %v2550, %v2566
  %v2583 = vadd.f32 %v2551, %v2567
  %v2584 = vadd.f32 %v2552, %v2568
  %v2585 = vadd.f32 %v2553, %v2569
  %v2586 = vadd.f32 %v2554, %v2570
  %v2587 = vadd.f32 %v2555, %v2571
  %v2588 = vpack.c.bf16 %v2573, %v2572
  %v2589 = vpack.c.bf16 %v2575, %v2574
  %v2590 = vpack.c.bf16 %v2577, %v2576
  %v2591 = vpack.c.bf16 %v2579, %v2578
  %v2592 = vpack.c.bf16 %v2581, %v2580
  %v2593 = vpack.c.bf16 %v2583, %v2582
  %v2594 = vpack.c.bf16 %v2585, %v2584
  %v2595 = vpack.c.bf16 %v2587, %v2586
  %v2604 = vunpack.c.l.b16 %v2588
  %v2605 = vunpack.c.h.b16 %v2588
  %v2606 = vunpack.c.l.b16 %v2589
  %v2607 = vunpack.c.h.b16 %v2589
  %v2608 = vunpack.c.l.b16 %v2590
  %v2609 = vunpack.c.h.b16 %v2590
  %v2610 = vunpack.c.l.b16 %v2591
  %v2611 = vunpack.c.h.b16 %v2591
  %v2612 = vunpack.c.l.b16 %v2592
  %v2613 = vunpack.c.h.b16 %v2592
  %v2614 = vunpack.c.l.b16 %v2593
  %v2615 = vunpack.c.h.b16 %v2593
  %v2616 = vunpack.c.l.b16 %v2594
  %v2617 = vunpack.c.h.b16 %v2594
  %v2618 = vunpack.c.l.b16 %v2595
  %v2619 = vunpack.c.h.b16 %v2595
  %v2620 = vpack.c.b16 %v2604, %v2604
  %v2621 = vpack.c.b16 %v2605, %v2605
  %v2622 = vpack.c.b16 %v2606, %v2606
  %v2623 = vpack.c.b16 %v2607, %v2607
  %v2624 = vpack.c.b16 %v2608, %v2608
  %v2625 = vpack.c.b16 %v2609, %v2609
  %v2626 = vpack.c.b16 %v2610, %v2610
  %v2627 = vpack.c.b16 %v2611, %v2611
  %v2628 = vpack.c.b16 %v2612, %v2612
  %v2629 = vpack.c.b16 %v2613, %v2613
  %v2630 = vpack.c.b16 %v2614, %v2614
  %v2631 = vpack.c.b16 %v2615, %v2615
  %v2632 = vpack.c.b16 %v2616, %v2616
  %v2633 = vpack.c.b16 %v2617, %v2617
  %v2634 = vpack.c.b16 %v2618, %v2618
  %v2635 = vpack.c.b16 %v2619, %v2619
  %s2652 = scalar_lea.vmem %s6, 192
  %2653 = vst.msk [vmem:[%s2652] sm:$0xf] %vm393, %v2620
  %2654 = vst.msk [vmem:[%s2652 + $0x4] sm:$0xf] %vm393, %v2621
  %2655 = vst.msk [vmem:[%s2652 + $0x8] sm:$0xf] %vm393, %v2622
  %2656 = vst.msk [vmem:[%s2652 + $0xc] sm:$0xf] %vm393, %v2623
  %2657 = vst.msk [vmem:[%s2652 + $0x10] sm:$0xf] %vm393, %v2624
  %2658 = vst.msk [vmem:[%s2652 + $0x14] sm:$0xf] %vm393, %v2625
  %2659 = vst.msk [vmem:[%s2652 + $0x18] sm:$0xf] %vm393, %v2626
  %2660 = vst.msk [vmem:[%s2652 + $0x1c] sm:$0xf] %vm393, %v2627
  %2661 = vst.msk [vmem:[%s2652 + $0x20] sm:$0xf] %vm393, %v2628
  %2662 = vst.msk [vmem:[%s2652 + $0x24] sm:$0xf] %vm393, %v2629
  %2663 = vst.msk [vmem:[%s2652 + $0x28] sm:$0xf] %vm393, %v2630
  %2664 = vst.msk [vmem:[%s2652 + $0x2c] sm:$0xf] %vm393, %v2631
  %2665 = vst.msk [vmem:[%s2652 + $0x30] sm:$0xf] %vm393, %v2632
  %2666 = vst.msk [vmem:[%s2652 + $0x34] sm:$0xf] %vm393, %v2633
  %2667 = vst.msk [vmem:[%s2652 + $0x38] sm:$0xf] %vm393, %v2634
  %2668 = vst.msk [vmem:[%s2652 + $0x3c] sm:$0xf] %vm393, %v2635
  // Predicated region
  $region22: #{tpu_custom_call.1} parent=0 // pred_check
    _
  $region23: #{tpu_custom_call.1} parent=0 // pred_check_branch
    %2670 = sbr.rel (0) target = $region25
  $region24: #{tpu_custom_call.1} parent=0 // pred_region
    _
  $region25: #{tpu_custom_call.1} parent=0 // pred_fallthru
    _
  // Predicated region
  $region26: #{tpu_custom_call.1} parent=0 // pred_check
    _
  $region27: #{tpu_custom_call.1} parent=0 // pred_check_branch
    %2672 = sbr.rel (0) target = $region29
  $region28: #{tpu_custom_call.1} parent=0 // pred_region
    _
  $region29: #{tpu_custom_call.1} parent=0 // pred_fallthru
    _
  // Predicated region
  $region30: #{tpu_custom_call.1} parent=0 // pred_check
    _
  $region31: #{tpu_custom_call.1} parent=0 // pred_check_branch
    %2674 = sbr.rel (0) target = $region33
  $region32: #{tpu_custom_call.1} parent=0 // pred_region
    _
  $region33: #{tpu_custom_call.1} parent=0 // pred_fallthru
    _
  // Predicated region
  $region34: #{tpu_custom_call.1} parent=0 // pred_check
    _
  $region35: #{tpu_custom_call.1} parent=0 // pred_check_branch
    %2676 = sbr.rel (0) target = $region37
  $region36: #{tpu_custom_call.1} parent=0 // pred_region
    _
  $region37: #{tpu_custom_call.1} parent=0 // pred_fallthru
    _

</llo_original>
